<compile_context>
chip_gen: v7x
topology: tpu7x:2x2x1
jax: 0.10.0
libtpu: 0.0.40
codegen_flags: <defaults>
</compile_context>

<pallas_src>
import numpy as np
import jax
import jax.numpy as jnp
from jax import lax
from jax.experimental import pallas as pl
from jax.experimental.pallas import tpu as pltpu


def _round_up(a, b):
    return ((a + b - 1) // b) * b


def _vmem_capacity_bytes():
    """Best-effort query of physical VMEM; conservative 64 MiB (v7x) fallback."""
    try:
        info = pltpu.get_tpu_info()
        cap = int(getattr(info, "vmem_capacity_bytes", 0) or 0)
        if cap > 0:
            return cap
    except Exception:
        pass
    return 64 << 20


def make_fista_gram_kernel(k, theta, mom_coeffs, compute_dtype):
    """FISTA with the Gram reformulation.

    Operands are pre-scaled by 1/L outside the kernel:
      phi_s = phi / L,  gram_s = (phi^T phi) / L.
    Per tile:  c = y @ phi_s  (once);   loop:  u = x + c - x @ gram_s.
    """

    def kernel(y_ref, phi_ref, gram_ref, x_ref):
        y = y_ref[...]            # (TB, m)  f32
        phi_s = phi_ref[...]      # (m, n)   compute_dtype, already * 1/L
        gram_s = gram_ref[...]    # (n, n)   compute_dtype, already * 1/L

        # c = (1/L) * y @ phi  -- hoisted out of the serial FISTA loop.
        c = jnp.dot(y.astype(compute_dtype), phi_s,
                    preferred_element_type=jnp.float32)          # (TB, n)

        x = jnp.zeros(x_ref.shape, jnp.float32)
        z = x
        # k is small & static -> unroll (exact scalar t-sequence baked in).
        # TODO(synk): switch to lax.fori_loop + SMEM momentum coeffs if k grows
        # beyond ~16 (unrolled live ranges inflate VMEM pressure at block_b=256).
        for i in range(k):
            zold = z
            # u = x + (1/L)*(y@phi - x@(phi^T phi)): one canonical-orientation
            # MXU matmul on the serial dependency chain, no transposed RHS.
            u = x + c - jnp.dot(x.astype(compute_dtype), gram_s,
                                preferred_element_type=jnp.float32)
            # soft_threshold(u, theta) == u - clip(u, -theta, theta)  (3 VPU ops)
            z = u - jnp.clip(u, -theta, theta)
            x = z + mom_coeffs[i] * (z - zold)
        x_ref[...] = x

    return kernel


def make_fista_twomatmul_kernel(k, inv_L, theta, mom_coeffs, compute_dtype):
    """Fallback (Gram matrix too large for VMEM): two matmuls per iteration."""

    def kernel(y_ref, phi_ref, x_ref):
        y = y_ref[...]            # (TB, m)  f32
        phi_c = phi_ref[...]      # (m, n)   compute_dtype

        x = jnp.zeros(x_ref.shape, jnp.float32)
        z = x
        # TODO(synk): verify with pl.lower_as_mlir that the transposed-RHS
        # dot_general below does not emit a per-iteration XLU transpose of phi;
        # if it does, transpose phi once into a persistent VMEM scratch.
        for i in range(k):
            zold = z
            # a = y - x @ phi^T  (contract the n-axes directly; no phi^T copy).
            a = y - lax.dot_general(
                x.astype(compute_dtype), phi_c,
                dimension_numbers=(((1,), (1,)), ((), ())),
                preferred_element_type=jnp.float32)              # (TB, m)
            # Scale the smaller (TB, m) operand before the second matmul.
            u = x + jnp.dot((inv_L * a).astype(compute_dtype), phi_c,
                            preferred_element_type=jnp.float32)  # (TB, n)
            z = u - jnp.clip(u, -theta, theta)
            x = z + mom_coeffs[i] * (z - zold)
        x_ref[...] = x

    return kernel


def fista_forward(y, phi, lmbda, k, *, block_b=None,
                  compute_dtype=jnp.float32, use_gram=None):
    """JAX/Pallas equivalent of FISTA.forward(y, info) -> (x, 0, 0).

    L (and hence 1/L, lmbda/L, the momentum coefficients) is computed with
    numpy at trace time, exactly as the PyTorch module does; `phi` must be a
    concrete array (do not jit this wrapper over a traced phi).
    `compute_dtype=jnp.bfloat16` is valid on all generations (v5e/v6e/v7x):
    only the MXU inputs are bf16, iterates and accumulation stay f32.
    """
    y = jnp.asarray(y, jnp.float32)
    phi_np = np.asarray(phi, np.float32)
    B, m = y.shape
    m2, n = phi_np.shape
    assert m == m2, (y.shape, phi_np.shape)

    # L = max eigenvalue of phi @ phi.T (same numpy recipe as the PyTorch module).
    L = float(np.max(np.linalg.eigvals(phi_np @ phi_np.T).real.astype(np.float32)))
    if compute_dtype != jnp.float32:
        L *= 1.001   # safety margin: ||phi_bf16||^2 can marginally exceed f32 L
    inv_L = np.float32(1.0 / L)
    theta = np.float32(lmbda / L)

    # Data-independent momentum coefficients (t0 - 1) / t, exact t-sequence.
    t = 1.0
    mom = []
    for _ in range(k):
        t0 = t
        t = (1.0 + np.sqrt(1.0 + 4.0 * t ** 2)) / 2.0
        mom.append(np.float32((t0 - 1.0) / t))

    cd_bytes = jnp.dtype(compute_dtype).itemsize
    phi_bytes = m * n * cd_bytes
    gram_bytes = n * n * cd_bytes
    vmem_cap = _vmem_capacity_bytes()

    # Gram reformulation: equal FLOPs at n = 2m, strictly fewer below, and one
    # matmul on the serial chain instead of two.  Skip it if G will not fit.
    if use_gram is None:
        use_gram = (n <= 2 * m) and (2 * (phi_bytes + gram_bytes) <= vmem_cap // 2)

    # ---- batch tile ------------------------------------------------------
    # f32 packs 8 rows / sublane group, bf16 packs 16.  Target 256 rows to
    # fill the MXU M-port on v6e/v7x (2x256^2); 256 is also a multiple of
    # v5e's 128.  TODO(synk): on v7x prefer an even (>=2) number of batch
    # tiles so both TensorCores stay busy when B would otherwise fit one tile.
    sublane = 8 if compute_dtype == jnp.float32 else 16
    if block_b is None:
        block_b = min(_round_up(B, sublane), 256)
    block_b = max(sublane, _round_up(min(block_b, _round_up(B, sublane)), sublane))

    resident_bytes = (phi_bytes + gram_bytes) if use_gram else phi_bytes

    def _budget(tb):
        tiles = 2 * tb * m * 4 + 2 * tb * n * 4                 # y / x double-buffered
        temps = (6 * tb * n + 2 * tb * m) * 4                   # live loop temporaries
        return 2 * resident_bytes + tiles + temps + (4 << 20)   # + Mosaic scratch

    while block_b > sublane and _budget(block_b) > vmem_cap:
        block_b = max(sublane, ((block_b // 2) // sublane) * sublane)

    # Pad batch so every tile is full (rows are independent; padded rows are
    # zeros -> finite work, dropped by the final slice).
    B_pad = _round_up(B, block_b)
    if B_pad != B:
        y = jnp.pad(y, ((0, B_pad - B), (0, 0)))
    grid = (B_pad // block_b,)

    vmem_limit = int(min(max(_budget(block_b), 16 << 20), min(vmem_cap, 128 << 20)))

    if use_gram:
        gram_np = (phi_np.T @ phi_np).astype(np.float32)
        phi_s = jnp.asarray(inv_L * phi_np, compute_dtype)
        gram_s = jnp.asarray(inv_L * gram_np, compute_dtype)
        kernel = make_fista_gram_kernel(k, theta, mom, compute_dtype)
        operands = (y, phi_s, gram_s)
        flops = 2 * B_pad * m * n + 2 * k * B_pad * n * n
        bytes_acc = B_pad * m * 4 + phi_bytes + gram_bytes + B_pad * n * 4
    else:
        phi_c = jnp.asarray(phi_np, compute_dtype)
        kernel = make_fista_twomatmul_kernel(k, inv_L, theta, mom, compute_dtype)
        operands = (y, phi_c)
        flops = 4 * k * B_pad * m * n
        bytes_acc = B_pad * m * 4 + phi_bytes + B_pad * n * 4

    cost = pl.CostEstimate(flops=int(flops), transcendentals=0,
                           bytes_accessed=int(bytes_acc))

    def _call(single_buffer_resident):
        def res_spec(shape):
            idx = lambda i: (0,) * len(shape)
            if single_buffer_resident:
                # Grid-invariant operands do not need double-buffering.
                return pl.BlockSpec(shape, idx, pipeline_mode=pl.Buffered(1))
            return pl.BlockSpec(shape, idx)

        in_specs = [pl.BlockSpec((block_b, m), lambda i: (i, 0))]   # y: batch tile
        in_specs.append(res_spec((m, n)))                           # phi (resident)
        if use_gram:
            in_specs.append(res_spec((n, n)))                       # gram (resident)

        return pl.pallas_call(
            kernel,
            out_shape=jax.ShapeDtypeStruct((B_pad, n), jnp.float32),
            grid=grid,
            in_specs=in_specs,
            out_specs=pl.BlockSpec((block_b, n), lambda i: (i, 0)),
            compiler_params=pltpu.CompilerParams(
                dimension_semantics=("parallel",),   # independent batch tiles
                vmem_limit_bytes=vmem_limit),
            cost_estimate=cost,
        )(*operands)

    try:
        x = _call(True)
    except Exception:
        # pipeline_mode=pl.Buffered(1) not available on this jax/Mosaic version.
        x = _call(False)

    if B_pad != B:
        x = x[:B]
    return (x, 0, 0)


def fista_reference(y, phi, lmbda, k):
    """Pure-numpy reference mirroring the PyTorch forward exactly."""
    y = np.asarray(y, np.float32)
    phi = np.asarray(phi, np.float32)
    B, m = y.shape
    n = phi.shape[1]
    L = float(np.max(np.linalg.eigvals(phi @ phi.T).real.astype(np.float32)))
    x = np.zeros((B, n), np.float32)
    t = 1.0
    z = x
    for _ in range(k):
        zold = z
        a = y - (phi @ x.T).T
        b = (phi.T @ a.T).T
        u = x + (1.0 / L) * b
        z = np.sign(u) * np.maximum(np.abs(u) - lmbda / L, 0.0)
        t0 = t
        t = (1.0 + np.sqrt(1.0 + 4.0 * t ** 2)) / 2.0
        x = z + (t0 - 1.0) / t * (z - zold)
    return x.astype(np.float32)


if __name__ == "__main__":
    # Small but TPU-friendly shapes: lane dims (m, n) are multiples of 128,
    # batch is a multiple of the 8-row f32 sublane tile.
    B, m, n, k = 16, 128, 256, 8
    lmbda = 0.1

    key = jax.random.PRNGKey(0)
    k_phi, k_y = jax.random.split(key)
    phi = jax.random.normal(k_phi, (m, n), dtype=jnp.float32) / np.sqrt(m)
    y = jax.random.normal(k_y, (B, m), dtype=jnp.float32)

    x_ref = fista_reference(np.asarray(y), np.asarray(phi), lmbda, k)

    # Default path (Gram formulation, f32).
    x, _, _ = fista_forward(y, phi, lmbda, k)
    x = jax.block_until_ready(x)
    np.testing.assert_allclose(np.asarray(x), x_ref, rtol=1e-3, atol=1e-3)

    # Two-matmul fallback path (used when the Gram matrix would not fit VMEM).
    x2, _, _ = fista_forward(y, phi, lmbda, k, use_gram=False)
    x2 = jax.block_until_ready(x2)
    np.testing.assert_allclose(np.asarray(x2), x_ref, rtol=1e-3, atol=1e-3)

    # bf16-MXU fast path (f32 iterates / f32 accumulation) — sanity check only.
    x_bf, _, _ = fista_forward(y, phi, lmbda, k, compute_dtype=jnp.bfloat16)
    x_bf = jax.block_until_ready(x_bf)
    assert np.all(np.isfinite(np.asarray(x_bf)))
    assert float(np.max(np.abs(np.asarray(x_bf) - x_ref))) < 0.1

    print("KERNEL_OK")
</pallas_src>

<mosaic_0001>
module attributes {stable_mosaic.version = 11 : i64} {
  func.func @kernel(%arg0: i32, %arg1: memref<16x128xf32, #tpu.memory_space<vmem>>, %arg2: memref<128x256xf32, #tpu.memory_space<vmem>>, %arg3: memref<256x256xf32, #tpu.memory_space<vmem>>, %arg4: memref<16x256xf32, #tpu.memory_space<vmem>>) attributes {dimension_semantics = [#tpu.dimension_semantics<parallel>], iteration_bounds = array<i64: 1>, scalar_prefetch = 0 : i64, scratch_operands = 0 : i64, tpu.core_type = #tpu.core_type<tc>, window_params = [{transform_indices = @transform_0, window_bounds = array<i64: 16, 128>}, {pipeline_mode = #tpu.pipeline_mode<synchronous>, transform_indices = @transform_1, window_bounds = array<i64: 128, 256>}, {pipeline_mode = #tpu.pipeline_mode<synchronous>, transform_indices = @transform_2, window_bounds = array<i64: 256, 256>}, {transform_indices = @transform_3, window_bounds = array<i64: 16, 256>}]} {
    %c0 = arith.constant 0 : index
    %c0_0 = arith.constant 0 : index
    %0 = vector.load %arg1[%c0, %c0_0] : memref<16x128xf32, #tpu.memory_space<vmem>>, vector<16x128xf32>
    %c0_1 = arith.constant 0 : index
    %c0_2 = arith.constant 0 : index
    %1 = vector.load %arg2[%c0_1, %c0_2] : memref<128x256xf32, #tpu.memory_space<vmem>>, vector<128x256xf32>
    %c0_3 = arith.constant 0 : index
    %c0_4 = arith.constant 0 : index
    %2 = vector.load %arg3[%c0_3, %c0_4] : memref<256x256xf32, #tpu.memory_space<vmem>>, vector<256x256xf32>
    %cst = arith.constant dense<0.000000e+00> : vector<16x256xf32>
    %3 = tpu.matmul %0, %1, %cst {dimension_numbers = #tpu.dot_dimension_numbers<[1], [0], [0], [1], [0, 0, 1, 1], [], []>} : vector<16x128xf32>, vector<128x256xf32>, vector<16x256xf32> -> vector<16x256xf32>
    %cst_5 = arith.constant 0.000000e+00 : f32
    %4 = vector.broadcast %cst_5 : f32 to vector<16x256xf32>
    %5 = arith.addf %4, %3 : vector<16x256xf32>
    %cst_6 = arith.constant dense<0.000000e+00> : vector<16x256xf32>
    %6 = tpu.matmul %4, %2, %cst_6 {dimension_numbers = #tpu.dot_dimension_numbers<[1], [0], [0], [1], [0, 0, 1, 1], [], []>} : vector<16x256xf32>, vector<256x256xf32>, vector<16x256xf32> -> vector<16x256xf32>
    %7 = arith.subf %5, %6 : vector<16x256xf32>
    %cst_7 = arith.constant -0.0176574141 : f32
    %cst_8 = arith.constant 0.0176574141 : f32
    %8 = vector.broadcast %cst_7 : f32 to vector<16x256xf32>
    %9 = arith.maximumf %8, %7 : vector<16x256xf32>
    %10 = vector.broadcast %cst_8 : f32 to vector<16x256xf32>
    %11 = arith.minimumf %10, %9 : vector<16x256xf32>
    %12 = arith.subf %7, %11 : vector<16x256xf32>
    %13 = arith.subf %12, %4 : vector<16x256xf32>
    %cst_9 = arith.constant 0.000000e+00 : f32
    %14 = vector.broadcast %cst_9 : f32 to vector<16x256xf32>
    %15 = arith.mulf %14, %13 : vector<16x256xf32>
    %16 = arith.addf %12, %15 : vector<16x256xf32>
    %17 = arith.addf %16, %3 : vector<16x256xf32>
    %cst_10 = arith.constant dense<0.000000e+00> : vector<16x256xf32>
    %18 = tpu.matmul %16, %2, %cst_10 {dimension_numbers = #tpu.dot_dimension_numbers<[1], [0], [0], [1], [0, 0, 1, 1], [], []>} : vector<16x256xf32>, vector<256x256xf32>, vector<16x256xf32> -> vector<16x256xf32>
    %19 = arith.subf %17, %18 : vector<16x256xf32>
    %cst_11 = arith.constant -0.0176574141 : f32
    %cst_12 = arith.constant 0.0176574141 : f32
    %20 = vector.broadcast %cst_11 : f32 to vector<16x256xf32>
    %21 = arith.maximumf %20, %19 : vector<16x256xf32>
    %22 = vector.broadcast %cst_12 : f32 to vector<16x256xf32>
    %23 = arith.minimumf %22, %21 : vector<16x256xf32>
    %24 = arith.subf %19, %23 : vector<16x256xf32>
    %25 = arith.subf %24, %12 : vector<16x256xf32>
    %cst_13 = arith.constant 0.28175351 : f32
    %26 = vector.broadcast %cst_13 : f32 to vector<16x256xf32>
    %27 = arith.mulf %26, %25 : vector<16x256xf32>
    %28 = arith.addf %24, %27 : vector<16x256xf32>
    %29 = arith.addf %28, %3 : vector<16x256xf32>
    %cst_14 = arith.constant dense<0.000000e+00> : vector<16x256xf32>
    %30 = tpu.matmul %28, %2, %cst_14 {dimension_numbers = #tpu.dot_dimension_numbers<[1], [0], [0], [1], [0, 0, 1, 1], [], []>} : vector<16x256xf32>, vector<256x256xf32>, vector<16x256xf32> -> vector<16x256xf32>
    %31 = arith.subf %29, %30 : vector<16x256xf32>
    %cst_15 = arith.constant -0.0176574141 : f32
    %cst_16 = arith.constant 0.0176574141 : f32
    %32 = vector.broadcast %cst_15 : f32 to vector<16x256xf32>
    %33 = arith.maximumf %32, %31 : vector<16x256xf32>
    %34 = vector.broadcast %cst_16 : f32 to vector<16x256xf32>
    %35 = arith.minimumf %34, %33 : vector<16x256xf32>
    %36 = arith.subf %31, %35 : vector<16x256xf32>
    %37 = arith.subf %36, %24 : vector<16x256xf32>
    %cst_17 = arith.constant 0.434042782 : f32
    %38 = vector.broadcast %cst_17 : f32 to vector<16x256xf32>
    %39 = arith.mulf %38, %37 : vector<16x256xf32>
    %40 = arith.addf %36, %39 : vector<16x256xf32>
    %41 = arith.addf %40, %3 : vector<16x256xf32>
    %cst_18 = arith.constant dense<0.000000e+00> : vector<16x256xf32>
    %42 = tpu.matmul %40, %2, %cst_18 {dimension_numbers = #tpu.dot_dimension_numbers<[1], [0], [0], [1], [0, 0, 1, 1], [], []>} : vector<16x256xf32>, vector<256x256xf32>, vector<16x256xf32> -> vector<16x256xf32>
    %43 = arith.subf %41, %42 : vector<16x256xf32>
    %cst_19 = arith.constant -0.0176574141 : f32
    %cst_20 = arith.constant 0.0176574141 : f32
    %44 = vector.broadcast %cst_19 : f32 to vector<16x256xf32>
    %45 = arith.maximumf %44, %43 : vector<16x256xf32>
    %46 = vector.broadcast %cst_20 : f32 to vector<16x256xf32>
    %47 = arith.minimumf %46, %45 : vector<16x256xf32>
    %48 = arith.subf %43, %47 : vector<16x256xf32>
    %49 = arith.subf %48, %36 : vector<16x256xf32>
    %cst_21 = arith.constant 0.531063795 : f32
    %50 = vector.broadcast %cst_21 : f32 to vector<16x256xf32>
    %51 = arith.mulf %50, %49 : vector<16x256xf32>
    %52 = arith.addf %48, %51 : vector<16x256xf32>
    %53 = arith.addf %52, %3 : vector<16x256xf32>
    %cst_22 = arith.constant dense<0.000000e+00> : vector<16x256xf32>
    %54 = tpu.matmul %52, %2, %cst_22 {dimension_numbers = #tpu.dot_dimension_numbers<[1], [0], [0], [1], [0, 0, 1, 1], [], []>} : vector<16x256xf32>, vector<256x256xf32>, vector<16x256xf32> -> vector<16x256xf32>
    %55 = arith.subf %53, %54 : vector<16x256xf32>
    %cst_23 = arith.constant -0.0176574141 : f32
    %cst_24 = arith.constant 0.0176574141 : f32
    %56 = vector.broadcast %cst_23 : f32 to vector<16x256xf32>
    %57 = arith.maximumf %56, %55 : vector<16x256xf32>
    %58 = vector.broadcast %cst_24 : f32 to vector<16x256xf32>
    %59 = arith.minimumf %58, %57 : vector<16x256xf32>
    %60 = arith.subf %55, %59 : vector<16x256xf32>
    %61 = arith.subf %60, %48 : vector<16x256xf32>
    %cst_25 = arith.constant 0.598778605 : f32
    %62 = vector.broadcast %cst_25 : f32 to vector<16x256xf32>
    %63 = arith.mulf %62, %61 : vector<16x256xf32>
    %64 = arith.addf %60, %63 : vector<16x256xf32>
    %65 = arith.addf %64, %3 : vector<16x256xf32>
    %cst_26 = arith.constant dense<0.000000e+00> : vector<16x256xf32>
    %66 = tpu.matmul %64, %2, %cst_26 {dimension_numbers = #tpu.dot_dimension_numbers<[1], [0], [0], [1], [0, 0, 1, 1], [], []>} : vector<16x256xf32>, vector<256x256xf32>, vector<16x256xf32> -> vector<16x256xf32>
    %67 = arith.subf %65, %66 : vector<16x256xf32>
    %cst_27 = arith.constant -0.0176574141 : f32
    %cst_28 = arith.constant 0.0176574141 : f32
    %68 = vector.broadcast %cst_27 : f32 to vector<16x256xf32>
    %69 = arith.maximumf %68, %67 : vector<16x256xf32>
    %70 = vector.broadcast %cst_28 : f32 to vector<16x256xf32>
    %71 = arith.minimumf %70, %69 : vector<16x256xf32>
    %72 = arith.subf %67, %71 : vector<16x256xf32>
    %73 = arith.subf %72, %60 : vector<16x256xf32>
    %cst_29 = arith.constant 0.648923337 : f32
    %74 = vector.broadcast %cst_29 : f32 to vector<16x256xf32>
    %75 = arith.mulf %74, %73 : vector<16x256xf32>
    %76 = arith.addf %72, %75 : vector<16x256xf32>
    %77 = arith.addf %76, %3 : vector<16x256xf32>
    %cst_30 = arith.constant dense<0.000000e+00> : vector<16x256xf32>
    %78 = tpu.matmul %76, %2, %cst_30 {dimension_numbers = #tpu.dot_dimension_numbers<[1], [0], [0], [1], [0, 0, 1, 1], [], []>} : vector<16x256xf32>, vector<256x256xf32>, vector<16x256xf32> -> vector<16x256xf32>
    %79 = arith.subf %77, %78 : vector<16x256xf32>
    %cst_31 = arith.constant -0.0176574141 : f32
    %cst_32 = arith.constant 0.0176574141 : f32
    %80 = vector.broadcast %cst_31 : f32 to vector<16x256xf32>
    %81 = arith.maximumf %80, %79 : vector<16x256xf32>
    %82 = vector.broadcast %cst_32 : f32 to vector<16x256xf32>
    %83 = arith.minimumf %82, %81 : vector<16x256xf32>
    %84 = arith.subf %79, %83 : vector<16x256xf32>
    %85 = arith.subf %84, %72 : vector<16x256xf32>
    %cst_33 = arith.constant 0.687645852 : f32
    %86 = vector.broadcast %cst_33 : f32 to vector<16x256xf32>
    %87 = arith.mulf %86, %85 : vector<16x256xf32>
    %88 = arith.addf %84, %87 : vector<16x256xf32>
    %89 = arith.addf %88, %3 : vector<16x256xf32>
    %cst_34 = arith.constant dense<0.000000e+00> : vector<16x256xf32>
    %90 = tpu.matmul %88, %2, %cst_34 {dimension_numbers = #tpu.dot_dimension_numbers<[1], [0], [0], [1], [0, 0, 1, 1], [], []>} : vector<16x256xf32>, vector<256x256xf32>, vector<16x256xf32> -> vector<16x256xf32>
    %91 = arith.subf %89, %90 : vector<16x256xf32>
    %cst_35 = arith.constant -0.0176574141 : f32
    %cst_36 = arith.constant 0.0176574141 : f32
    %92 = vector.broadcast %cst_35 : f32 to vector<16x256xf32>
    %93 = arith.maximumf %92, %91 : vector<16x256xf32>
    %94 = vector.broadcast %cst_36 : f32 to vector<16x256xf32>
    %95 = arith.minimumf %94, %93 : vector<16x256xf32>
    %96 = arith.subf %91, %95 : vector<16x256xf32>
    %97 = arith.subf %96, %84 : vector<16x256xf32>
    %cst_37 = arith.constant 0.718499839 : f32
    %98 = vector.broadcast %cst_37 : f32 to vector<16x256xf32>
    %99 = arith.mulf %98, %97 : vector<16x256xf32>
    %100 = arith.addf %96, %99 : vector<16x256xf32>
    %c0_38 = arith.constant 0 : index
    %c0_39 = arith.constant 0 : index
    %101 = vector.load %arg4[%c0_38, %c0_39] : memref<16x256xf32, #tpu.memory_space<vmem>>, vector<16x256xf32>
    tpu.vector_store %arg4[%c0_38, %c0_39], %100 {strides = array<i32>} : memref<16x256xf32, #tpu.memory_space<vmem>>, vector<16x256xf32>,
    return
  }
  func.func @transform_0(%arg0: i32) -> (i32, i32) {
    %c0_i32 = arith.constant 0 : i32
    %c0_i32_0 = arith.constant 0 : i32
    return %arg0, %c0_i32 : i32, i32
  }
  func.func @transform_1(%arg0: i32) -> (i32, i32) {
    %c0_i32 = arith.constant 0 : i32
    %c0_i32_0 = arith.constant 0 : i32
    %c0_i32_1 = arith.constant 0 : i32
    return %c0_i32, %c0_i32_0 : i32, i32
  }
  func.func @transform_2(%arg0: i32) -> (i32, i32) {
    %c0_i32 = arith.constant 0 : i32
    %c0_i32_0 = arith.constant 0 : i32
    %c0_i32_1 = arith.constant 0 : i32
    return %c0_i32, %c0_i32_0 : i32, i32
  }
  func.func @transform_3(%arg0: i32) -> (i32, i32) {
    %c0_i32 = arith.constant 0 : i32
    %c0_i32_0 = arith.constant 0 : i32
    return %arg0, %c0_i32 : i32, i32
  }
}

module attributes {stable_mosaic.version = 11 : i64} {
  func.func @kernel(%arg0: i32, %arg1: memref<16x128xf32, #tpu.memory_space<vmem>>, %arg2: memref<128x256xf32, #tpu.memory_space<vmem>>, %arg3: memref<256x256xf32, #tpu.memory_space<vmem>>, %arg4: memref<16x256xf32, #tpu.memory_space<vmem>>) attributes {dimension_semantics = [#tpu.dimension_semantics<parallel>], iteration_bounds = array<i64: 1>, scalar_prefetch = 0 : i64, scratch_operands = 0 : i64, tpu.core_type = #tpu.core_type<tc>, window_params = [{transform_indices = @transform_0, window_bounds = array<i64: 16, 128>}, {pipeline_mode = #tpu.pipeline_mode<synchronous>, transform_indices = @transform_1, window_bounds = array<i64: 128, 256>}, {pipeline_mode = #tpu.pipeline_mode<synchronous>, transform_indices = @transform_2, window_bounds = array<i64: 256, 256>}, {transform_indices = @transform_3, window_bounds = array<i64: 16, 256>}]} {
    %c0 = arith.constant 0 : index
    %c0_0 = arith.constant 0 : index
    %0 = vector.load %arg1[%c0, %c0_0] : memref<16x128xf32, #tpu.memory_space<vmem>>, vector<16x128xf32>
    %c0_1 = arith.constant 0 : index
    %c0_2 = arith.constant 0 : index
    %1 = vector.load %arg2[%c0_1, %c0_2] : memref<128x256xf32, #tpu.memory_space<vmem>>, vector<128x256xf32>
    %c0_3 = arith.constant 0 : index
    %c0_4 = arith.constant 0 : index
    %2 = vector.load %arg3[%c0_3, %c0_4] : memref<256x256xf32, #tpu.memory_space<vmem>>, vector<256x256xf32>
    %cst = arith.constant dense<0.000000e+00> : vector<16x256xf32>
    %3 = tpu.matmul %0, %1, %cst {dimension_numbers = #tpu.dot_dimension_numbers<[1], [0], [0], [1], [0, 0, 1, 1], [], []>} : vector<16x128xf32>, vector<128x256xf32>, vector<16x256xf32> -> vector<16x256xf32>
    %cst_5 = arith.constant 0.000000e+00 : f32
    %4 = vector.broadcast %cst_5 : f32 to vector<16x256xf32>
    %5 = arith.addf %4, %3 : vector<16x256xf32>
    %cst_6 = arith.constant dense<0.000000e+00> : vector<16x256xf32>
    %6 = tpu.matmul %4, %2, %cst_6 {dimension_numbers = #tpu.dot_dimension_numbers<[1], [0], [0], [1], [0, 0, 1, 1], [], []>} : vector<16x256xf32>, vector<256x256xf32>, vector<16x256xf32> -> vector<16x256xf32>
    %7 = arith.subf %5, %6 : vector<16x256xf32>
    %cst_7 = arith.constant -0.0176574141 : f32
    %cst_8 = arith.constant 0.0176574141 : f32
    %8 = vector.broadcast %cst_7 : f32 to vector<16x256xf32>
    %9 = arith.maximumf %8, %7 : vector<16x256xf32>
    %10 = vector.broadcast %cst_8 : f32 to vector<16x256xf32>
    %11 = arith.minimumf %10, %9 : vector<16x256xf32>
    %12 = arith.subf %7, %11 : vector<16x256xf32>
    %13 = arith.subf %12, %4 : vector<16x256xf32>
    %cst_9 = arith.constant 0.000000e+00 : f32
    %14 = vector.broadcast %cst_9 : f32 to vector<16x256xf32>
    %15 = arith.mulf %14, %13 : vector<16x256xf32>
    %16 = arith.addf %12, %15 : vector<16x256xf32>
    %17 = arith.addf %16, %3 : vector<16x256xf32>
    %cst_10 = arith.constant dense<0.000000e+00> : vector<16x256xf32>
    %18 = tpu.matmul %16, %2, %cst_10 {dimension_numbers = #tpu.dot_dimension_numbers<[1], [0], [0], [1], [0, 0, 1, 1], [], []>} : vector<16x256xf32>, vector<256x256xf32>, vector<16x256xf32> -> vector<16x256xf32>
    %19 = arith.subf %17, %18 : vector<16x256xf32>
    %cst_11 = arith.constant -0.0176574141 : f32
    %cst_12 = arith.constant 0.0176574141 : f32
    %20 = vector.broadcast %cst_11 : f32 to vector<16x256xf32>
    %21 = arith.maximumf %20, %19 : vector<16x256xf32>
    %22 = vector.broadcast %cst_12 : f32 to vector<16x256xf32>
    %23 = arith.minimumf %22, %21 : vector<16x256xf32>
    %24 = arith.subf %19, %23 : vector<16x256xf32>
    %25 = arith.subf %24, %12 : vector<16x256xf32>
    %cst_13 = arith.constant 0.28175351 : f32
    %26 = vector.broadcast %cst_13 : f32 to vector<16x256xf32>
    %27 = arith.mulf %26, %25 : vector<16x256xf32>
    %28 = arith.addf %24, %27 : vector<16x256xf32>
    %29 = arith.addf %28, %3 : vector<16x256xf32>
    %cst_14 = arith.constant dense<0.000000e+00> : vector<16x256xf32>
    %30 = tpu.matmul %28, %2, %cst_14 {dimension_numbers = #tpu.dot_dimension_numbers<[1], [0], [0], [1], [0, 0, 1, 1], [], []>} : vector<16x256xf32>, vector<256x256xf32>, vector<16x256xf32> -> vector<16x256xf32>
    %31 = arith.subf %29, %30 : vector<16x256xf32>
    %cst_15 = arith.constant -0.0176574141 : f32
    %cst_16 = arith.constant 0.0176574141 : f32
    %32 = vector.broadcast %cst_15 : f32 to vector<16x256xf32>
    %33 = arith.maximumf %32, %31 : vector<16x256xf32>
    %34 = vector.broadcast %cst_16 : f32 to vector<16x256xf32>
    %35 = arith.minimumf %34, %33 : vector<16x256xf32>
    %36 = arith.subf %31, %35 : vector<16x256xf32>
    %37 = arith.subf %36, %24 : vector<16x256xf32>
    %cst_17 = arith.constant 0.434042782 : f32
    %38 = vector.broadcast %cst_17 : f32 to vector<16x256xf32>
    %39 = arith.mulf %38, %37 : vector<16x256xf32>
    %40 = arith.addf %36, %39 : vector<16x256xf32>
    %41 = arith.addf %40, %3 : vector<16x256xf32>
    %cst_18 = arith.constant dense<0.000000e+00> : vector<16x256xf32>
    %42 = tpu.matmul %40, %2, %cst_18 {dimension_numbers = #tpu.dot_dimension_numbers<[1], [0], [0], [1], [0, 0, 1, 1], [], []>} : vector<16x256xf32>, vector<256x256xf32>, vector<16x256xf32> -> vector<16x256xf32>
    %43 = arith.subf %41, %42 : vector<16x256xf32>
    %cst_19 = arith.constant -0.0176574141 : f32
    %cst_20 = arith.constant 0.0176574141 : f32
    %44 = vector.broadcast %cst_19 : f32 to vector<16x256xf32>
    %45 = arith.maximumf %44, %43 : vector<16x256xf32>
    %46 = vector.broadcast %cst_20 : f32 to vector<16x256xf32>
    %47 = arith.minimumf %46, %45 : vector<16x256xf32>
    %48 = arith.subf %43, %47 : vector<16x256xf32>
    %49 = arith.subf %48, %36 : vector<16x256xf32>
    %cst_21 = arith.constant 0.531063795 : f32
    %50 = vector.broadcast %cst_21 : f32 to vector<16x256xf32>
    %51 = arith.mulf %50, %49 : vector<16x256xf32>
    %52 = arith.addf %48, %51 : vector<16x256xf32>
    %53 = arith.addf %52, %3 : vector<16x256xf32>
    %cst_22 = arith.constant dense<0.000000e+00> : vector<16x256xf32>
    %54 = tpu.matmul %52, %2, %cst_22 {dimension_numbers = #tpu.dot_dimension_numbers<[1], [0], [0], [1], [0, 0, 1, 1], [], []>} : vector<16x256xf32>, vector<256x256xf32>, vector<16x256xf32> -> vector<16x256xf32>
    %55 = arith.subf %53, %54 : vector<16x256xf32>
    %cst_23 = arith.constant -0.0176574141 : f32
    %cst_24 = arith.constant 0.0176574141 : f32
    %56 = vector.broadcast %cst_23 : f32 to vector<16x256xf32>
    %57 = arith.maximumf %56, %55 : vector<16x256xf32>
    %58 = vector.broadcast %cst_24 : f32 to vector<16x256xf32>
    %59 = arith.minimumf %58, %57 : vector<16x256xf32>
    %60 = arith.subf %55, %59 : vector<16x256xf32>
    %61 = arith.subf %60, %48 : vector<16x256xf32>
    %cst_25 = arith.constant 0.598778605 : f32
    %62 = vector.broadcast %cst_25 : f32 to vector<16x256xf32>
    %63 = arith.mulf %62, %61 : vector<16x256xf32>
    %64 = arith.addf %60, %63 : vector<16x256xf32>
    %65 = arith.addf %64, %3 : vector<16x256xf32>
    %cst_26 = arith.constant dense<0.000000e+00> : vector<16x256xf32>
    %66 = tpu.matmul %64, %2, %cst_26 {dimension_numbers = #tpu.dot_dimension_numbers<[1], [0], [0], [1], [0, 0, 1, 1], [], []>} : vector<16x256xf32>, vector<256x256xf32>, vector<16x256xf32> -> vector<16x256xf32>
    %67 = arith.subf %65, %66 : vector<16x256xf32>
    %cst_27 = arith.constant -0.0176574141 : f32
    %cst_28 = arith.constant 0.0176574141 : f32
    %68 = vector.broadcast %cst_27 : f32 to vector<16x256xf32>
    %69 = arith.maximumf %68, %67 : vector<16x256xf32>
    %70 = vector.broadcast %cst_28 : f32 to vector<16x256xf32>
    %71 = arith.minimumf %70, %69 : vector<16x256xf32>
    %72 = arith.subf %67, %71 : vector<16x256xf32>
    %73 = arith.subf %72, %60 : vector<16x256xf32>
    %cst_29 = arith.constant 0.648923337 : f32
    %74 = vector.broadcast %cst_29 : f32 to vector<16x256xf32>
    %75 = arith.mulf %74, %73 : vector<16x256xf32>
    %76 = arith.addf %72, %75 : vector<16x256xf32>
    %77 = arith.addf %76, %3 : vector<16x256xf32>
    %cst_30 = arith.constant dense<0.000000e+00> : vector<16x256xf32>
    %78 = tpu.matmul %76, %2, %cst_30 {dimension_numbers = #tpu.dot_dimension_numbers<[1], [0], [0], [1], [0, 0, 1, 1], [], []>} : vector<16x256xf32>, vector<256x256xf32>, vector<16x256xf32> -> vector<16x256xf32>
    %79 = arith.subf %77, %78 : vector<16x256xf32>
    %cst_31 = arith.constant -0.0176574141 : f32
    %cst_32 = arith.constant 0.0176574141 : f32
    %80 = vector.broadcast %cst_31 : f32 to vector<16x256xf32>
    %81 = arith.maximumf %80, %79 : vector<16x256xf32>
    %82 = vector.broadcast %cst_32 : f32 to vector<16x256xf32>
    %83 = arith.minimumf %82, %81 : vector<16x256xf32>
    %84 = arith.subf %79, %83 : vector<16x256xf32>
    %85 = arith.subf %84, %72 : vector<16x256xf32>
    %cst_33 = arith.constant 0.687645852 : f32
    %86 = vector.broadcast %cst_33 : f32 to vector<16x256xf32>
    %87 = arith.mulf %86, %85 : vector<16x256xf32>
    %88 = arith.addf %84, %87 : vector<16x256xf32>
    %89 = arith.addf %88, %3 : vector<16x256xf32>
    %cst_34 = arith.constant dense<0.000000e+00> : vector<16x256xf32>
    %90 = tpu.matmul %88, %2, %cst_34 {dimension_numbers = #tpu.dot_dimension_numbers<[1], [0], [0], [1], [0, 0, 1, 1], [], []>} : vector<16x256xf32>, vector<256x256xf32>, vector<16x256xf32> -> vector<16x256xf32>
    %91 = arith.subf %89, %90 : vector<16x256xf32>
    %cst_35 = arith.constant -0.0176574141 : f32
    %cst_36 = arith.constant 0.0176574141 : f32
    %92 = vector.broadcast %cst_35 : f32 to vector<16x256xf32>
    %93 = arith.maximumf %92, %91 : vector<16x256xf32>
    %94 = vector.broadcast %cst_36 : f32 to vector<16x256xf32>
    %95 = arith.minimumf %94, %93 : vector<16x256xf32>
    %96 = arith.subf %91, %95 : vector<16x256xf32>
    %97 = arith.subf %96, %84 : vector<16x256xf32>
    %cst_37 = arith.constant 0.718499839 : f32
    %98 = vector.broadcast %cst_37 : f32 to vector<16x256xf32>
    %99 = arith.mulf %98, %97 : vector<16x256xf32>
    %100 = arith.addf %96, %99 : vector<16x256xf32>
    %c0_38 = arith.constant 0 : index
    %c0_39 = arith.constant 0 : index
    %101 = vector.load %arg4[%c0_38, %c0_39] : memref<16x256xf32, #tpu.memory_space<vmem>>, vector<16x256xf32>
    tpu.vector_store %arg4[%c0_38, %c0_39], %100 {strides = array<i32>} : memref<16x256xf32, #tpu.memory_space<vmem>>, vector<16x256xf32>,
    return
  }
  func.func @transform_0(%arg0: i32) -> (i32, i32) {
    %c0_i32 = arith.constant 0 : i32
    %c0_i32_0 = arith.constant 0 : i32
    return %arg0, %c0_i32 : i32, i32
  }
  func.func @transform_1(%arg0: i32) -> (i32, i32) {
    %c0_i32 = arith.constant 0 : i32
    %c0_i32_0 = arith.constant 0 : i32
    %c0_i32_1 = arith.constant 0 : i32
    return %c0_i32, %c0_i32_0 : i32, i32
  }
  func.func @transform_2(%arg0: i32) -> (i32, i32) {
    %c0_i32 = arith.constant 0 : i32
    %c0_i32_0 = arith.constant 0 : i32
    %c0_i32_1 = arith.constant 0 : i32
    return %c0_i32, %c0_i32_0 : i32, i32
  }
  func.func @transform_3(%arg0: i32) -> (i32, i32) {
    %c0_i32 = arith.constant 0 : i32
    %c0_i32_0 = arith.constant 0 : i32
    return %arg0, %c0_i32 : i32, i32
  }
}

</mosaic_0001>

<llo_original>
// kernel: tpu_custom_call.1
$region0: #{tpu_custom_call.1}
  #allocation0 [shape = 'u32[]', space=smem, size = 0x4, offset = 0x4, fixed_abs, tag = 'smem constant byte address 0x4 - core index']
  #allocation1 [shape = 'u32[144,128]{1,0:T(1,128)}', space=vmem, size = 0x12000, scoped, tag = 'internal scratch']
  %s0 = inlined_call_operand.hbm [shape: f32[16,128], index: 0, kind: input, shape index: {}]
  %s1 = inlined_call_operand.hbm [shape: f32[128,256], index: 1, kind: input, shape index: {}]
  %s2 = inlined_call_operand.hbm [shape: f32[256,256], index: 2, kind: input, shape index: {}]
  %s3 = inlined_call_operand.hbm [shape: f32[16,256], index: 3, kind: output, shape index: {}]
  %s4 = sld [smem:[#allocation0]]
  $region34: #{tpu_custom_call.1} parent=0
    _
  %s6 = ssub.s32 1, %s4
  %s7 = scalar_select 0, %s6, %s4
  $region1: #{tpu_custom_call.1} parent=0
    #allocation2 [shape = 'u8[8192]{0}', space=vmem, size = 0x2000, scoped, tag = 'input window, operand 0, single buffered']
    #allocation3 [shape = 's32[1]{0}', space=sflag, size = 0x4, scoped, tag = 'scoped memory for tpu_custom_call.1']
    #allocation4 [shape = 's32[1]{0}', space=sflag, size = 0x4, scoped, tag = 'scoped memory for tpu_custom_call.1']
    #allocation5 [shape = 'u8[131072]{0}', space=vmem, size = 0x20000, scoped, tag = 'input window, operand 1, single buffered']
    #allocation6 [shape = 's32[1]{0}', space=sflag, size = 0x4, scoped, tag = 'scoped memory for tpu_custom_call.1']
    #allocation7 [shape = 'u8[262144]{0}', space=vmem, size = 0x40000, scoped, tag = 'input window, operand 2, single buffered']
    #allocation8 [shape = 'u8[16384]{0}', space=vmem, size = 0x4000, scoped, tag = 'output window, operand 0, single buffered']
    %8 = vsyncpa [#allocation3], 0
    %9 = vsyncpa [#allocation6], 0
    %10 = vsyncpa [#allocation4], 0
    // Predicated region
    $region2: #{tpu_custom_call.1} parent=1 // pred_check
      _
    $region3: #{tpu_custom_call.1} parent=1 // pred_check_branch
      %12 = sbr.rel (0) target = $region5
    $region4: #{tpu_custom_call.1} parent=1 // pred_region
      %s14 = ssub.s32 256, 256
      %15 = vsyncadd [#allocation3], %s14
      %s16 = sshll.u32 [#allocation2], 4
      %s17 = int_to_ptr.vmem [resolvable:$true] %s16
      %22 = dma.hbm_to_vmem [thread:$0]  %s0, 256, %s17, [#allocation3], 128, 128, 8
    $region5: #{tpu_custom_call.1} parent=1 // pred_fallthru
      _
    // Predicated region
    $region6: #{tpu_custom_call.1} parent=1 // pred_check
      _
    $region7: #{tpu_custom_call.1} parent=1 // pred_check_branch
      %24 = sbr.rel (0) target = $region9
    $region8: #{tpu_custom_call.1} parent=1 // pred_region
      %s26 = ssub.s32 4096, 4096
      %27 = vsyncadd [#allocation6], %s26
      %s28 = sshll.u32 [#allocation5], 4
      %s29 = int_to_ptr.vmem [resolvable:$true] %s28
      %34 = dma.hbm_to_vmem [thread:$0]  %s1, 4096, %s29, [#allocation6], 256, 256, 16
    $region9: #{tpu_custom_call.1} parent=1 // pred_fallthru
      _
    // Predicated region
    $region10: #{tpu_custom_call.1} parent=1 // pred_check
      _
    $region11: #{tpu_custom_call.1} parent=1 // pred_check_branch
      %36 = sbr.rel (0) target = $region13
    $region12: #{tpu_custom_call.1} parent=1 // pred_region
      %s38 = ssub.s32 8192, 8192
      %39 = vsyncadd [#allocation6], %s38
      %s40 = sshll.u32 [#allocation7], 4
      %s41 = int_to_ptr.vmem [resolvable:$true] %s40
      %46 = dma.hbm_to_vmem [thread:$0]  %s2, 8192, %s41, [#allocation6], 256, 256, 16
    $region13: #{tpu_custom_call.1} parent=1 // pred_fallthru
      _
    // Predicated region
    $region14: #{tpu_custom_call.1} parent=1 // pred_check
      _
    $region15: #{tpu_custom_call.1} parent=1 // pred_check_branch
      %48 = sbr.rel (0) target = $region17
    $region16: #{tpu_custom_call.1} parent=1 // pred_region
      %49 = dma.done [#allocation3], 256
    $region17: #{tpu_custom_call.1} parent=1 // pred_fallthru
      _
    // Predicated region
    $region18: #{tpu_custom_call.1} parent=1 // pred_check
      _
    $region19: #{tpu_custom_call.1} parent=1 // pred_check_branch
      %51 = sbr.rel (0) target = $region21
    $region20: #{tpu_custom_call.1} parent=1 // pred_region
      %52 = dma.done [#allocation6], 4096
    $region21: #{tpu_custom_call.1} parent=1 // pred_fallthru
      _
    // Predicated region
    $region22: #{tpu_custom_call.1} parent=1 // pred_check
      _
    $region23: #{tpu_custom_call.1} parent=1 // pred_check_branch
      %54 = sbr.rel (0) target = $region25
    $region24: #{tpu_custom_call.1} parent=1 // pred_region
      %55 = dma.done [#allocation6], 8192
    $region25: #{tpu_custom_call.1} parent=1 // pred_fallthru
      _
    %v56 = vld [vmem:[#allocation2] sm:$0xff]
    %v57 = vld [vmem:[#allocation2 + $0x8] sm:$0xff]
    %v58 = vld [vmem:[#allocation5] sm:$0xff]
    %v59 = vld [vmem:[#allocation5 + $0x8] sm:$0xff]
    %v60 = vld [vmem:[#allocation5 + $0x10] sm:$0xff]
    %v61 = vld [vmem:[#allocation5 + $0x18] sm:$0xff]
    %v62 = vld [vmem:[#allocation5 + $0x20] sm:$0xff]
    %v63 = vld [vmem:[#allocation5 + $0x28] sm:$0xff]
    %v64 = vld [vmem:[#allocation5 + $0x30] sm:$0xff]
    %v65 = vld [vmem:[#allocation5 + $0x38] sm:$0xff]
    %v66 = vld [vmem:[#allocation5 + $0x40] sm:$0xff]
    %v67 = vld [vmem:[#allocation5 + $0x48] sm:$0xff]
    %v68 = vld [vmem:[#allocation5 + $0x50] sm:$0xff]
    %v69 = vld [vmem:[#allocation5 + $0x58] sm:$0xff]
    %v70 = vld [vmem:[#allocation5 + $0x60] sm:$0xff]
    %v71 = vld [vmem:[#allocation5 + $0x68] sm:$0xff]
    %v72 = vld [vmem:[#allocation5 + $0x70] sm:$0xff]
    %v73 = vld [vmem:[#allocation5 + $0x78] sm:$0xff]
    %v74 = vld [vmem:[#allocation5 + $0x80] sm:$0xff]
    %v75 = vld [vmem:[#allocation5 + $0x88] sm:$0xff]
    %v76 = vld [vmem:[#allocation5 + $0x90] sm:$0xff]
    %v77 = vld [vmem:[#allocation5 + $0x98] sm:$0xff]
    %v78 = vld [vmem:[#allocation5 + $0xa0] sm:$0xff]
    %v79 = vld [vmem:[#allocation5 + $0xa8] sm:$0xff]
    %v80 = vld [vmem:[#allocation5 + $0xb0] sm:$0xff]
    %v81 = vld [vmem:[#allocation5 + $0xb8] sm:$0xff]
    %v82 = vld [vmem:[#allocation5 + $0xc0] sm:$0xff]
    %v83 = vld [vmem:[#allocation5 + $0xc8] sm:$0xff]
    %v84 = vld [vmem:[#allocation5 + $0xd0] sm:$0xff]
    %v85 = vld [vmem:[#allocation5 + $0xd8] sm:$0xff]
    %v86 = vld [vmem:[#allocation5 + $0xe0] sm:$0xff]
    %v87 = vld [vmem:[#allocation5 + $0xe8] sm:$0xff]
    %v88 = vld [vmem:[#allocation5 + $0xf0] sm:$0xff]
    %v89 = vld [vmem:[#allocation5 + $0xf8] sm:$0xff]
    %v90 = vld [vmem:[#allocation7] sm:$0xff]
    %v91 = vld [vmem:[#allocation7 + $0x8] sm:$0xff]
    %v92 = vld [vmem:[#allocation7 + $0x10] sm:$0xff]
    %v93 = vld [vmem:[#allocation7 + $0x18] sm:$0xff]
    %v94 = vld [vmem:[#allocation7 + $0x20] sm:$0xff]
    %v95 = vld [vmem:[#allocation7 + $0x28] sm:$0xff]
    %v96 = vld [vmem:[#allocation7 + $0x30] sm:$0xff]
    %v97 = vld [vmem:[#allocation7 + $0x38] sm:$0xff]
    %v98 = vld [vmem:[#allocation7 + $0x40] sm:$0xff]
    %v99 = vld [vmem:[#allocation7 + $0x48] sm:$0xff]
    %v100 = vld [vmem:[#allocation7 + $0x50] sm:$0xff]
    %v101 = vld [vmem:[#allocation7 + $0x58] sm:$0xff]
    %v102 = vld [vmem:[#allocation7 + $0x60] sm:$0xff]
    %v103 = vld [vmem:[#allocation7 + $0x68] sm:$0xff]
    %v104 = vld [vmem:[#allocation7 + $0x70] sm:$0xff]
    %v105 = vld [vmem:[#allocation7 + $0x78] sm:$0xff]
    %v106 = vld [vmem:[#allocation7 + $0x80] sm:$0xff]
    %v107 = vld [vmem:[#allocation7 + $0x88] sm:$0xff]
    %v108 = vld [vmem:[#allocation7 + $0x90] sm:$0xff]
    %v109 = vld [vmem:[#allocation7 + $0x98] sm:$0xff]
    %v110 = vld [vmem:[#allocation7 + $0xa0] sm:$0xff]
    %v111 = vld [vmem:[#allocation7 + $0xa8] sm:$0xff]
    %v112 = vld [vmem:[#allocation7 + $0xb0] sm:$0xff]
    %v113 = vld [vmem:[#allocation7 + $0xb8] sm:$0xff]
    %v114 = vld [vmem:[#allocation7 + $0xc0] sm:$0xff]
    %v115 = vld [vmem:[#allocation7 + $0xc8] sm:$0xff]
    %v116 = vld [vmem:[#allocation7 + $0xd0] sm:$0xff]
    %v117 = vld [vmem:[#allocation7 + $0xd8] sm:$0xff]
    %v118 = vld [vmem:[#allocation7 + $0xe0] sm:$0xff]
    %v119 = vld [vmem:[#allocation7 + $0xe8] sm:$0xff]
    %v120 = vld [vmem:[#allocation7 + $0xf0] sm:$0xff]
    %v121 = vld [vmem:[#allocation7 + $0xf8] sm:$0xff]
    %v122 = vld [vmem:[#allocation7 + $0x100] sm:$0xff]
    %v123 = vld [vmem:[#allocation7 + $0x108] sm:$0xff]
    %v124 = vld [vmem:[#allocation7 + $0x110] sm:$0xff]
    %v125 = vld [vmem:[#allocation7 + $0x118] sm:$0xff]
    %v126 = vld [vmem:[#allocation7 + $0x120] sm:$0xff]
    %v127 = vld [vmem:[#allocation7 + $0x128] sm:$0xff]
    %v128 = vld [vmem:[#allocation7 + $0x130] sm:$0xff]
    %v129 = vld [vmem:[#allocation7 + $0x138] sm:$0xff]
    %v130 = vld [vmem:[#allocation7 + $0x140] sm:$0xff]
    %v131 = vld [vmem:[#allocation7 + $0x148] sm:$0xff]
    %v132 = vld [vmem:[#allocation7 + $0x150] sm:$0xff]
    %v133 = vld [vmem:[#allocation7 + $0x158] sm:$0xff]
    %v134 = vld [vmem:[#allocation7 + $0x160] sm:$0xff]
    %v135 = vld [vmem:[#allocation7 + $0x168] sm:$0xff]
    %v136 = vld [vmem:[#allocation7 + $0x170] sm:$0xff]
    %v137 = vld [vmem:[#allocation7 + $0x178] sm:$0xff]
    %v138 = vld [vmem:[#allocation7 + $0x180] sm:$0xff]
    %v139 = vld [vmem:[#allocation7 + $0x188] sm:$0xff]
    %v140 = vld [vmem:[#allocation7 + $0x190] sm:$0xff]
    %v141 = vld [vmem:[#allocation7 + $0x198] sm:$0xff]
    %v142 = vld [vmem:[#allocation7 + $0x1a0] sm:$0xff]
    %v143 = vld [vmem:[#allocation7 + $0x1a8] sm:$0xff]
    %v144 = vld [vmem:[#allocation7 + $0x1b0] sm:$0xff]
    %v145 = vld [vmem:[#allocation7 + $0x1b8] sm:$0xff]
    %v146 = vld [vmem:[#allocation7 + $0x1c0] sm:$0xff]
    %v147 = vld [vmem:[#allocation7 + $0x1c8] sm:$0xff]
    %v148 = vld [vmem:[#allocation7 + $0x1d0] sm:$0xff]
    %v149 = vld [vmem:[#allocation7 + $0x1d8] sm:$0xff]
    %v150 = vld [vmem:[#allocation7 + $0x1e0] sm:$0xff]
    %v151 = vld [vmem:[#allocation7 + $0x1e8] sm:$0xff]
    %v152 = vld [vmem:[#allocation7 + $0x1f0] sm:$0xff]
    %v153 = vld [vmem:[#allocation7 + $0x1f8] sm:$0xff]
    %154 = vmatprep.subr.mxu0 %v59
    %155 = vmatpush1.msra.mxu0 %v58
    %156 = vmatprep.subr.mxu0 %v61
    %157 = vmatpush1.msra.mxu0 %v60
    %158 = vmatprep.subr.mxu0 %v63
    %159 = vmatpush1.msra.mxu0 %v62
    %160 = vmatprep.subr.mxu0 %v65
    %161 = vmatpush1.msra.mxu0 %v64
    %162 = vmatprep.subr.mxu0 %v67
    %163 = vmatpush1.msra.mxu0 %v66
    %164 = vmatprep.subr.mxu0 %v69
    %165 = vmatpush1.msra.mxu0 %v68
    %166 = vmatprep.subr.mxu0 %v71
    %167 = vmatpush1.msra.mxu0 %v70
    %168 = vmatprep.subr.mxu0 %v73
    %169 = vmatpush1.msra.mxu0 %v72
    %170 = vmatprep.subr.mxu0 %v75
    %171 = vmatpush1.msra.mxu0 %v74
    %172 = vmatprep.subr.mxu0 %v77
    %173 = vmatpush1.msra.mxu0 %v76
    %174 = vmatprep.subr.mxu0 %v79
    %175 = vmatpush1.msra.mxu0 %v78
    %176 = vmatprep.subr.mxu0 %v81
    %177 = vmatpush1.msra.mxu0 %v80
    %178 = vmatprep.subr.mxu0 %v83
    %179 = vmatpush1.msra.mxu0 %v82
    %180 = vmatprep.subr.mxu0 %v85
    %181 = vmatpush1.msra.mxu0 %v84
    %182 = vmatprep.subr.mxu0 %v87
    %183 = vmatpush1.msra.mxu0 %v86
    %184 = vmatprep.subr.mxu0 %v89
    %185 = vmatpush1.msra.mxu0 %v88
    %186 = vmatprep.subr.mxu0 0.0
    %187 = vmatpush1.msra.mxu0 0.0
    %188 = vmatprep.subr.mxu0 0.0
    %189 = vmatpush1.msra.mxu0 0.0
    %190 = vmatprep.subr.mxu0 0.0
    %191 = vmatpush1.msra.mxu0 0.0
    %192 = vmatprep.subr.mxu0 0.0
    %193 = vmatpush1.msra.mxu0 0.0
    %194 = vmatprep.subr.mxu0 0.0
    %195 = vmatpush1.msra.mxu0 0.0
    %196 = vmatprep.subr.mxu0 0.0
    %197 = vmatpush1.msra.mxu0 0.0
    %198 = vmatprep.subr.mxu0 0.0
    %199 = vmatpush1.msra.mxu0 0.0
    %200 = vmatprep.subr.mxu0 0.0
    %201 = vmatpush1.msra.mxu0 0.0
    %202 = vmatprep.subr.mxu0 0.0
    %203 = vmatpush1.msra.mxu0 0.0
    %204 = vmatprep.subr.mxu0 0.0
    %205 = vmatpush1.msra.mxu0 0.0
    %206 = vmatprep.subr.mxu0 0.0
    %207 = vmatpush1.msra.mxu0 0.0
    %208 = vmatprep.subr.mxu0 0.0
    %209 = vmatpush1.msra.mxu0 0.0
    %210 = vmatprep.subr.mxu0 0.0
    %211 = vmatpush1.msra.mxu0 0.0
    %212 = vmatprep.subr.mxu0 0.0
    %213 = vmatpush1.msra.mxu0 0.0
    %214 = vmatprep.subr.mxu0 0.0
    %215 = vmatpush1.msra.mxu0 0.0
    %216 = vmatprep.subr.mxu0 0.0
    %217 = vmatpush1.msra.mxu0 0.0
    %218 = vmatprep.mubr.f32.mxu0 0.0
    %219 = vmatmul.mubr.f32.gmra.mrb[0].mxu0 %v56
    %v220 = vpop.f32.mrb[0].mxu0
    %v221 = vadd.f32 0.0, %v220
    %v222 = vpop.f32.mrb[0].mxu0
    %v223 = vadd.f32 0.0, %v222
    %224 = vmatprep.mubr.f32.mxu0 0.0
    %225 = vmatmul.mubr.f32.gmra.mrb[0].mxu0 %v57
    %v226 = vpop.f32.mrb[0].mxu0
    %v227 = vadd.f32 0.0, %v226
    %v228 = vpop.f32.mrb[0].mxu0
    %v229 = vadd.f32 0.0, %v228
    %230 = vdwg.mxu0
    %v231 = vadd.f32 %v221, 0.0
    %v232 = vadd.f32 %v223, 0.0
    %v233 = vadd.f32 %v227, 0.0
    %v234 = vadd.f32 %v229, 0.0
    %235 = vmatprep.subr.mxu0 %v91
    %236 = vmatpush1.msra.mxu0 %v90
    %237 = vmatprep.subr.mxu0 %v93
    %238 = vmatpush1.msra.mxu0 %v92
    %239 = vmatprep.subr.mxu0 %v95
    %240 = vmatpush1.msra.mxu0 %v94
    %241 = vmatprep.subr.mxu0 %v97
    %242 = vmatpush1.msra.mxu0 %v96
    %243 = vmatprep.subr.mxu0 %v99
    %244 = vmatpush1.msra.mxu0 %v98
    %245 = vmatprep.subr.mxu0 %v101
    %246 = vmatpush1.msra.mxu0 %v100
    %247 = vmatprep.subr.mxu0 %v103
    %248 = vmatpush1.msra.mxu0 %v102
    %249 = vmatprep.subr.mxu0 %v105
    %250 = vmatpush1.msra.mxu0 %v104
    %251 = vmatprep.subr.mxu0 %v107
    %252 = vmatpush1.msra.mxu0 %v106
    %253 = vmatprep.subr.mxu0 %v109
    %254 = vmatpush1.msra.mxu0 %v108
    %255 = vmatprep.subr.mxu0 %v111
    %256 = vmatpush1.msra.mxu0 %v110
    %257 = vmatprep.subr.mxu0 %v113
    %258 = vmatpush1.msra.mxu0 %v112
    %259 = vmatprep.subr.mxu0 %v115
    %260 = vmatpush1.msra.mxu0 %v114
    %261 = vmatprep.subr.mxu0 %v117
    %262 = vmatpush1.msra.mxu0 %v116
    %263 = vmatprep.subr.mxu0 %v119
    %264 = vmatpush1.msra.mxu0 %v118
    %265 = vmatprep.subr.mxu0 %v121
    %266 = vmatpush1.msra.mxu0 %v120
    %267 = vmatprep.subr.mxu0 %v123
    %268 = vmatpush1.msra.mxu0 %v122
    %269 = vmatprep.subr.mxu0 %v125
    %270 = vmatpush1.msra.mxu0 %v124
    %271 = vmatprep.subr.mxu0 %v127
    %272 = vmatpush1.msra.mxu0 %v126
    %273 = vmatprep.subr.mxu0 %v129
    %274 = vmatpush1.msra.mxu0 %v128
    %275 = vmatprep.subr.mxu0 %v131
    %276 = vmatpush1.msra.mxu0 %v130
    %277 = vmatprep.subr.mxu0 %v133
    %278 = vmatpush1.msra.mxu0 %v132
    %279 = vmatprep.subr.mxu0 %v135
    %280 = vmatpush1.msra.mxu0 %v134
    %281 = vmatprep.subr.mxu0 %v137
    %282 = vmatpush1.msra.mxu0 %v136
    %283 = vmatprep.subr.mxu0 %v139
    %284 = vmatpush1.msra.mxu0 %v138
    %285 = vmatprep.subr.mxu0 %v141
    %286 = vmatpush1.msra.mxu0 %v140
    %287 = vmatprep.subr.mxu0 %v143
    %288 = vmatpush1.msra.mxu0 %v142
    %289 = vmatprep.subr.mxu0 %v145
    %290 = vmatpush1.msra.mxu0 %v144
    %291 = vmatprep.subr.mxu0 %v147
    %292 = vmatpush1.msra.mxu0 %v146
    %293 = vmatprep.subr.mxu0 %v149
    %294 = vmatpush1.msra.mxu0 %v148
    %295 = vmatprep.subr.mxu0 %v151
    %296 = vmatpush1.msra.mxu0 %v150
    %297 = vmatprep.subr.mxu0 %v153
    %298 = vmatpush1.msra.mxu0 %v152
    %299 = vmatprep.mubr.f32.mxu0 0.0
    %300 = vmatmul.mubr.f32.gmra.mrb[0].mxu0 0.0
    %v301 = vpop.f32.mrb[0].mxu0
    %v302 = vadd.f32 0.0, %v301
    %v303 = vpop.f32.mrb[0].mxu0
    %v304 = vadd.f32 0.0, %v303
    %305 = vmatprep.mubr.f32.mxu0 0.0
    %306 = vmatmul.mubr.f32.gmra.mrb[0].mxu0 0.0
    %v307 = vpop.f32.mrb[0].mxu0
    %v308 = vadd.f32 0.0, %v307
    %v309 = vpop.f32.mrb[0].mxu0
    %v310 = vadd.f32 0.0, %v309
    %311 = vdwg.mxu0
    %v312 = vsub.f32 %v231, %v302
    %v313 = vsub.f32 %v232, %v304
    %v314 = vsub.f32 %v233, %v308
    %v315 = vsub.f32 %v234, %v310
    %v316 = vmax.f32 %v312, -0.017657414
    %v317 = vmax.f32 %v313, -0.017657414
    %v318 = vmax.f32 %v314, -0.017657414
    %v319 = vmax.f32 %v315, -0.017657414
    %v320 = vmin.f32 %v316, 0.017657414
    %v321 = vmin.f32 %v317, 0.017657414
    %v322 = vmin.f32 %v318, 0.017657414
    %v323 = vmin.f32 %v319, 0.017657414
    %v324 = vsub.f32 %v312, %v320
    %v325 = vsub.f32 %v313, %v321
    %v326 = vsub.f32 %v314, %v322
    %v327 = vsub.f32 %v315, %v323
    %v328 = vmul.f32 %v324, 0.0
    %v329 = vmul.f32 %v325, 0.0
    %v330 = vmul.f32 %v326, 0.0
    %v331 = vmul.f32 %v327, 0.0
    %v332 = vadd.f32 %v324, %v328
    %v333 = vadd.f32 %v325, %v329
    %v334 = vadd.f32 %v326, %v330
    %v335 = vadd.f32 %v327, %v331
    %v336 = vadd.f32 %v332, %v221
    %v337 = vadd.f32 %v333, %v223
    %v338 = vadd.f32 %v334, %v227
    %v339 = vadd.f32 %v335, %v229
    %340 = vmatprep.subr.mxu0 %v91
    %341 = vmatpush1.msra.mxu0 %v90
    %342 = vmatprep.subr.mxu0 %v93
    %343 = vmatpush1.msra.mxu0 %v92
    %344 = vmatprep.subr.mxu0 %v95
    %345 = vmatpush1.msra.mxu0 %v94
    %346 = vmatprep.subr.mxu0 %v97
    %347 = vmatpush1.msra.mxu0 %v96
    %348 = vmatprep.subr.mxu0 %v99
    %349 = vmatpush1.msra.mxu0 %v98
    %350 = vmatprep.subr.mxu0 %v101
    %351 = vmatpush1.msra.mxu0 %v100
    %352 = vmatprep.subr.mxu0 %v103
    %353 = vmatpush1.msra.mxu0 %v102
    %354 = vmatprep.subr.mxu0 %v105
    %355 = vmatpush1.msra.mxu0 %v104
    %356 = vmatprep.subr.mxu0 %v107
    %357 = vmatpush1.msra.mxu0 %v106
    %358 = vmatprep.subr.mxu0 %v109
    %359 = vmatpush1.msra.mxu0 %v108
    %360 = vmatprep.subr.mxu0 %v111
    %361 = vmatpush1.msra.mxu0 %v110
    %362 = vmatprep.subr.mxu0 %v113
    %363 = vmatpush1.msra.mxu0 %v112
    %364 = vmatprep.subr.mxu0 %v115
    %365 = vmatpush1.msra.mxu0 %v114
    %366 = vmatprep.subr.mxu0 %v117
    %367 = vmatpush1.msra.mxu0 %v116
    %368 = vmatprep.subr.mxu0 %v119
    %369 = vmatpush1.msra.mxu0 %v118
    %370 = vmatprep.subr.mxu0 %v121
    %371 = vmatpush1.msra.mxu0 %v120
    %372 = vmatprep.subr.mxu0 %v123
    %373 = vmatpush1.msra.mxu0 %v122
    %374 = vmatprep.subr.mxu0 %v125
    %375 = vmatpush1.msra.mxu0 %v124
    %376 = vmatprep.subr.mxu0 %v127
    %377 = vmatpush1.msra.mxu0 %v126
    %378 = vmatprep.subr.mxu0 %v129
    %379 = vmatpush1.msra.mxu0 %v128
    %380 = vmatprep.subr.mxu0 %v131
    %381 = vmatpush1.msra.mxu0 %v130
    %382 = vmatprep.subr.mxu0 %v133
    %383 = vmatpush1.msra.mxu0 %v132
    %384 = vmatprep.subr.mxu0 %v135
    %385 = vmatpush1.msra.mxu0 %v134
    %386 = vmatprep.subr.mxu0 %v137
    %387 = vmatpush1.msra.mxu0 %v136
    %388 = vmatprep.subr.mxu0 %v139
    %389 = vmatpush1.msra.mxu0 %v138
    %390 = vmatprep.subr.mxu0 %v141
    %391 = vmatpush1.msra.mxu0 %v140
    %392 = vmatprep.subr.mxu0 %v143
    %393 = vmatpush1.msra.mxu0 %v142
    %394 = vmatprep.subr.mxu0 %v145
    %395 = vmatpush1.msra.mxu0 %v144
    %396 = vmatprep.subr.mxu0 %v147
    %397 = vmatpush1.msra.mxu0 %v146
    %398 = vmatprep.subr.mxu0 %v149
    %399 = vmatpush1.msra.mxu0 %v148
    %400 = vmatprep.subr.mxu0 %v151
    %401 = vmatpush1.msra.mxu0 %v150
    %402 = vmatprep.subr.mxu0 %v153
    %403 = vmatpush1.msra.mxu0 %v152
    %404 = vmatprep.mubr.f32.mxu0 %v333
    %405 = vmatmul.mubr.f32.gmra.mrb[0].mxu0 %v332
    %v406 = vpop.f32.mrb[0].mxu0
    %v407 = vadd.f32 0.0, %v406
    %v408 = vpop.f32.mrb[0].mxu0
    %v409 = vadd.f32 0.0, %v408
    %410 = vmatprep.mubr.f32.mxu0 %v335
    %411 = vmatmul.mubr.f32.gmra.mrb[0].mxu0 %v334
    %v412 = vpop.f32.mrb[0].mxu0
    %v413 = vadd.f32 0.0, %v412
    %v414 = vpop.f32.mrb[0].mxu0
    %v415 = vadd.f32 0.0, %v414
    %416 = vdwg.mxu0
    %v417 = vsub.f32 %v336, %v407
    %v418 = vsub.f32 %v337, %v409
    %v419 = vsub.f32 %v338, %v413
    %v420 = vsub.f32 %v339, %v415
    %v421 = vmax.f32 %v417, -0.017657414
    %v422 = vmax.f32 %v418, -0.017657414
    %v423 = vmax.f32 %v419, -0.017657414
    %v424 = vmax.f32 %v420, -0.017657414
    %v425 = vmin.f32 %v421, 0.017657414
    %v426 = vmin.f32 %v422, 0.017657414
    %v427 = vmin.f32 %v423, 0.017657414
    %v428 = vmin.f32 %v424, 0.017657414
    %v429 = vsub.f32 %v417, %v425
    %v430 = vsub.f32 %v418, %v426
    %v431 = vsub.f32 %v419, %v427
    %v432 = vsub.f32 %v420, %v428
    %v433 = vsub.f32 %v429, %v324
    %v434 = vsub.f32 %v430, %v325
    %v435 = vsub.f32 %v431, %v326
    %v436 = vsub.f32 %v432, %v327
    %v437 = vmul.f32 %v433, 0.2817535
    %v438 = vmul.f32 %v434, 0.2817535
    %v439 = vmul.f32 %v435, 0.2817535
    %v440 = vmul.f32 %v436, 0.2817535
    %v441 = vadd.f32 %v429, %v437
    %v442 = vadd.f32 %v430, %v438
    %v443 = vadd.f32 %v431, %v439
    %v444 = vadd.f32 %v432, %v440
    %v445 = vadd.f32 %v441, %v221
    %v446 = vadd.f32 %v442, %v223
    %v447 = vadd.f32 %v443, %v227
    %v448 = vadd.f32 %v444, %v229
    %449 = vmatprep.subr.mxu0 %v91
    %450 = vmatpush1.msra.mxu0 %v90
    %451 = vmatprep.subr.mxu0 %v93
    %452 = vmatpush1.msra.mxu0 %v92
    %453 = vmatprep.subr.mxu0 %v95
    %454 = vmatpush1.msra.mxu0 %v94
    %455 = vmatprep.subr.mxu0 %v97
    %456 = vmatpush1.msra.mxu0 %v96
    %457 = vmatprep.subr.mxu0 %v99
    %458 = vmatpush1.msra.mxu0 %v98
    %459 = vmatprep.subr.mxu0 %v101
    %460 = vmatpush1.msra.mxu0 %v100
    %461 = vmatprep.subr.mxu0 %v103
    %462 = vmatpush1.msra.mxu0 %v102
    %463 = vmatprep.subr.mxu0 %v105
    %464 = vmatpush1.msra.mxu0 %v104
    %465 = vmatprep.subr.mxu0 %v107
    %466 = vmatpush1.msra.mxu0 %v106
    %467 = vmatprep.subr.mxu0 %v109
    %468 = vmatpush1.msra.mxu0 %v108
    %469 = vmatprep.subr.mxu0 %v111
    %470 = vmatpush1.msra.mxu0 %v110
    %471 = vmatprep.subr.mxu0 %v113
    %472 = vmatpush1.msra.mxu0 %v112
    %473 = vmatprep.subr.mxu0 %v115
    %474 = vmatpush1.msra.mxu0 %v114
    %475 = vmatprep.subr.mxu0 %v117
    %476 = vmatpush1.msra.mxu0 %v116
    %477 = vmatprep.subr.mxu0 %v119
    %478 = vmatpush1.msra.mxu0 %v118
    %479 = vmatprep.subr.mxu0 %v121
    %480 = vmatpush1.msra.mxu0 %v120
    %481 = vmatprep.subr.mxu0 %v123
    %482 = vmatpush1.msra.mxu0 %v122
    %483 = vmatprep.subr.mxu0 %v125
    %484 = vmatpush1.msra.mxu0 %v124
    %485 = vmatprep.subr.mxu0 %v127
    %486 = vmatpush1.msra.mxu0 %v126
    %487 = vmatprep.subr.mxu0 %v129
    %488 = vmatpush1.msra.mxu0 %v128
    %489 = vmatprep.subr.mxu0 %v131
    %490 = vmatpush1.msra.mxu0 %v130
    %491 = vmatprep.subr.mxu0 %v133
    %492 = vmatpush1.msra.mxu0 %v132
    %493 = vmatprep.subr.mxu0 %v135
    %494 = vmatpush1.msra.mxu0 %v134
    %495 = vmatprep.subr.mxu0 %v137
    %496 = vmatpush1.msra.mxu0 %v136
    %497 = vmatprep.subr.mxu0 %v139
    %498 = vmatpush1.msra.mxu0 %v138
    %499 = vmatprep.subr.mxu0 %v141
    %500 = vmatpush1.msra.mxu0 %v140
    %501 = vmatprep.subr.mxu0 %v143
    %502 = vmatpush1.msra.mxu0 %v142
    %503 = vmatprep.subr.mxu0 %v145
    %504 = vmatpush1.msra.mxu0 %v144
    %505 = vmatprep.subr.mxu0 %v147
    %506 = vmatpush1.msra.mxu0 %v146
    %507 = vmatprep.subr.mxu0 %v149
    %508 = vmatpush1.msra.mxu0 %v148
    %509 = vmatprep.subr.mxu0 %v151
    %510 = vmatpush1.msra.mxu0 %v150
    %511 = vmatprep.subr.mxu0 %v153
    %512 = vmatpush1.msra.mxu0 %v152
    %513 = vmatprep.mubr.f32.mxu0 %v442
    %514 = vmatmul.mubr.f32.gmra.mrb[0].mxu0 %v441
    %v515 = vpop.f32.mrb[0].mxu0
    %v516 = vadd.f32 0.0, %v515
    %v517 = vpop.f32.mrb[0].mxu0
    %v518 = vadd.f32 0.0, %v517
    %519 = vmatprep.mubr.f32.mxu0 %v444
    %520 = vmatmul.mubr.f32.gmra.mrb[0].mxu0 %v443
    %v521 = vpop.f32.mrb[0].mxu0
    %v522 = vadd.f32 0.0, %v521
    %v523 = vpop.f32.mrb[0].mxu0
    %v524 = vadd.f32 0.0, %v523
    %525 = vdwg.mxu0
    %v526 = vsub.f32 %v445, %v516
    %v527 = vsub.f32 %v446, %v518
    %v528 = vsub.f32 %v447, %v522
    %v529 = vsub.f32 %v448, %v524
    %v530 = vmax.f32 %v526, -0.017657414
    %v531 = vmax.f32 %v527, -0.017657414
    %v532 = vmax.f32 %v528, -0.017657414
    %v533 = vmax.f32 %v529, -0.017657414
    %v534 = vmin.f32 %v530, 0.017657414
    %v535 = vmin.f32 %v531, 0.017657414
    %v536 = vmin.f32 %v532, 0.017657414
    %v537 = vmin.f32 %v533, 0.017657414
    %v538 = vsub.f32 %v526, %v534
    %v539 = vsub.f32 %v527, %v535
    %v540 = vsub.f32 %v528, %v536
    %v541 = vsub.f32 %v529, %v537
    %v542 = vsub.f32 %v538, %v429
    %v543 = vsub.f32 %v539, %v430
    %v544 = vsub.f32 %v540, %v431
    %v545 = vsub.f32 %v541, %v432
    %v546 = vmul.f32 %v542, 0.43404278
    %v547 = vmul.f32 %v543, 0.43404278
    %v548 = vmul.f32 %v544, 0.43404278
    %v549 = vmul.f32 %v545, 0.43404278
    %v550 = vadd.f32 %v538, %v546
    %v551 = vadd.f32 %v539, %v547
    %v552 = vadd.f32 %v540, %v548
    %v553 = vadd.f32 %v541, %v549
    %v554 = vadd.f32 %v550, %v221
    %v555 = vadd.f32 %v551, %v223
    %v556 = vadd.f32 %v552, %v227
    %v557 = vadd.f32 %v553, %v229
    %558 = vmatprep.subr.mxu0 %v91
    %559 = vmatpush1.msra.mxu0 %v90
    %560 = vmatprep.subr.mxu0 %v93
    %561 = vmatpush1.msra.mxu0 %v92
    %562 = vmatprep.subr.mxu0 %v95
    %563 = vmatpush1.msra.mxu0 %v94
    %564 = vmatprep.subr.mxu0 %v97
    %565 = vmatpush1.msra.mxu0 %v96
    %566 = vmatprep.subr.mxu0 %v99
    %567 = vmatpush1.msra.mxu0 %v98
    %568 = vmatprep.subr.mxu0 %v101
    %569 = vmatpush1.msra.mxu0 %v100
    %570 = vmatprep.subr.mxu0 %v103
    %571 = vmatpush1.msra.mxu0 %v102
    %572 = vmatprep.subr.mxu0 %v105
    %573 = vmatpush1.msra.mxu0 %v104
    %574 = vmatprep.subr.mxu0 %v107
    %575 = vmatpush1.msra.mxu0 %v106
    %576 = vmatprep.subr.mxu0 %v109
    %577 = vmatpush1.msra.mxu0 %v108
    %578 = vmatprep.subr.mxu0 %v111
    %579 = vmatpush1.msra.mxu0 %v110
    %580 = vmatprep.subr.mxu0 %v113
    %581 = vmatpush1.msra.mxu0 %v112
    %582 = vmatprep.subr.mxu0 %v115
    %583 = vmatpush1.msra.mxu0 %v114
    %584 = vmatprep.subr.mxu0 %v117
    %585 = vmatpush1.msra.mxu0 %v116
    %586 = vmatprep.subr.mxu0 %v119
    %587 = vmatpush1.msra.mxu0 %v118
    %588 = vmatprep.subr.mxu0 %v121
    %589 = vmatpush1.msra.mxu0 %v120
    %590 = vmatprep.subr.mxu0 %v123
    %591 = vmatpush1.msra.mxu0 %v122
    %592 = vmatprep.subr.mxu0 %v125
    %593 = vmatpush1.msra.mxu0 %v124
    %594 = vmatprep.subr.mxu0 %v127
    %595 = vmatpush1.msra.mxu0 %v126
    %596 = vmatprep.subr.mxu0 %v129
    %597 = vmatpush1.msra.mxu0 %v128
    %598 = vmatprep.subr.mxu0 %v131
    %599 = vmatpush1.msra.mxu0 %v130
    %600 = vmatprep.subr.mxu0 %v133
    %601 = vmatpush1.msra.mxu0 %v132
    %602 = vmatprep.subr.mxu0 %v135
    %603 = vmatpush1.msra.mxu0 %v134
    %604 = vmatprep.subr.mxu0 %v137
    %605 = vmatpush1.msra.mxu0 %v136
    %606 = vmatprep.subr.mxu0 %v139
    %607 = vmatpush1.msra.mxu0 %v138
    %608 = vmatprep.subr.mxu0 %v141
    %609 = vmatpush1.msra.mxu0 %v140
    %610 = vmatprep.subr.mxu0 %v143
    %611 = vmatpush1.msra.mxu0 %v142
    %612 = vmatprep.subr.mxu0 %v145
    %613 = vmatpush1.msra.mxu0 %v144
    %614 = vmatprep.subr.mxu0 %v147
    %615 = vmatpush1.msra.mxu0 %v146
    %616 = vmatprep.subr.mxu0 %v149
    %617 = vmatpush1.msra.mxu0 %v148
    %618 = vmatprep.subr.mxu0 %v151
    %619 = vmatpush1.msra.mxu0 %v150
    %620 = vmatprep.subr.mxu0 %v153
    %621 = vmatpush1.msra.mxu0 %v152
    %622 = vmatprep.mubr.f32.mxu0 %v551
    %623 = vmatmul.mubr.f32.gmra.mrb[0].mxu0 %v550
    %v624 = vpop.f32.mrb[0].mxu0
    %v625 = vadd.f32 0.0, %v624
    %v626 = vpop.f32.mrb[0].mxu0
    %v627 = vadd.f32 0.0, %v626
    %628 = vmatprep.mubr.f32.mxu0 %v553
    %629 = vmatmul.mubr.f32.gmra.mrb[0].mxu0 %v552
    %v630 = vpop.f32.mrb[0].mxu0
    %v631 = vadd.f32 0.0, %v630
    %v632 = vpop.f32.mrb[0].mxu0
    %v633 = vadd.f32 0.0, %v632
    %634 = vdwg.mxu0
    %v635 = vsub.f32 %v554, %v625
    %v636 = vsub.f32 %v555, %v627
    %v637 = vsub.f32 %v556, %v631
    %v638 = vsub.f32 %v557, %v633
    %v639 = vmax.f32 %v635, -0.017657414
    %v640 = vmax.f32 %v636, -0.017657414
    %v641 = vmax.f32 %v637, -0.017657414
    %v642 = vmax.f32 %v638, -0.017657414
    %v643 = vmin.f32 %v639, 0.017657414
    %v644 = vmin.f32 %v640, 0.017657414
    %v645 = vmin.f32 %v641, 0.017657414
    %v646 = vmin.f32 %v642, 0.017657414
    %v647 = vsub.f32 %v635, %v643
    %v648 = vsub.f32 %v636, %v644
    %v649 = vsub.f32 %v637, %v645
    %v650 = vsub.f32 %v638, %v646
    %v651 = vsub.f32 %v647, %v538
    %v652 = vsub.f32 %v648, %v539
    %v653 = vsub.f32 %v649, %v540
    %v654 = vsub.f32 %v650, %v541
    %v655 = vmul.f32 %v651, 0.5310638
    %v656 = vmul.f32 %v652, 0.5310638
    %v657 = vmul.f32 %v653, 0.5310638
    %v658 = vmul.f32 %v654, 0.5310638
    %v659 = vadd.f32 %v647, %v655
    %v660 = vadd.f32 %v648, %v656
    %v661 = vadd.f32 %v649, %v657
    %v662 = vadd.f32 %v650, %v658
    %v663 = vadd.f32 %v659, %v221
    %v664 = vadd.f32 %v660, %v223
    %v665 = vadd.f32 %v661, %v227
    %v666 = vadd.f32 %v662, %v229
    %667 = vmatprep.subr.mxu0 %v91
    %668 = vmatpush1.msra.mxu0 %v90
    %669 = vmatprep.subr.mxu0 %v93
    %670 = vmatpush1.msra.mxu0 %v92
    %671 = vmatprep.subr.mxu0 %v95
    %672 = vmatpush1.msra.mxu0 %v94
    %673 = vmatprep.subr.mxu0 %v97
    %674 = vmatpush1.msra.mxu0 %v96
    %675 = vmatprep.subr.mxu0 %v99
    %676 = vmatpush1.msra.mxu0 %v98
    %677 = vmatprep.subr.mxu0 %v101
    %678 = vmatpush1.msra.mxu0 %v100
    %679 = vmatprep.subr.mxu0 %v103
    %680 = vmatpush1.msra.mxu0 %v102
    %681 = vmatprep.subr.mxu0 %v105
    %682 = vmatpush1.msra.mxu0 %v104
    %683 = vmatprep.subr.mxu0 %v107
    %684 = vmatpush1.msra.mxu0 %v106
    %685 = vmatprep.subr.mxu0 %v109
    %686 = vmatpush1.msra.mxu0 %v108
    %687 = vmatprep.subr.mxu0 %v111
    %688 = vmatpush1.msra.mxu0 %v110
    %689 = vmatprep.subr.mxu0 %v113
    %690 = vmatpush1.msra.mxu0 %v112
    %691 = vmatprep.subr.mxu0 %v115
    %692 = vmatpush1.msra.mxu0 %v114
    %693 = vmatprep.subr.mxu0 %v117
    %694 = vmatpush1.msra.mxu0 %v116
    %695 = vmatprep.subr.mxu0 %v119
    %696 = vmatpush1.msra.mxu0 %v118
    %697 = vmatprep.subr.mxu0 %v121
    %698 = vmatpush1.msra.mxu0 %v120
    %699 = vmatprep.subr.mxu0 %v123
    %700 = vmatpush1.msra.mxu0 %v122
    %701 = vmatprep.subr.mxu0 %v125
    %702 = vmatpush1.msra.mxu0 %v124
    %703 = vmatprep.subr.mxu0 %v127
    %704 = vmatpush1.msra.mxu0 %v126
    %705 = vmatprep.subr.mxu0 %v129
    %706 = vmatpush1.msra.mxu0 %v128
    %707 = vmatprep.subr.mxu0 %v131
    %708 = vmatpush1.msra.mxu0 %v130
    %709 = vmatprep.subr.mxu0 %v133
    %710 = vmatpush1.msra.mxu0 %v132
    %711 = vmatprep.subr.mxu0 %v135
    %712 = vmatpush1.msra.mxu0 %v134
    %713 = vmatprep.subr.mxu0 %v137
    %714 = vmatpush1.msra.mxu0 %v136
    %715 = vmatprep.subr.mxu0 %v139
    %716 = vmatpush1.msra.mxu0 %v138
    %717 = vmatprep.subr.mxu0 %v141
    %718 = vmatpush1.msra.mxu0 %v140
    %719 = vmatprep.subr.mxu0 %v143
    %720 = vmatpush1.msra.mxu0 %v142
    %721 = vmatprep.subr.mxu0 %v145
    %722 = vmatpush1.msra.mxu0 %v144
    %723 = vmatprep.subr.mxu0 %v147
    %724 = vmatpush1.msra.mxu0 %v146
    %725 = vmatprep.subr.mxu0 %v149
    %726 = vmatpush1.msra.mxu0 %v148
    %727 = vmatprep.subr.mxu0 %v151
    %728 = vmatpush1.msra.mxu0 %v150
    %729 = vmatprep.subr.mxu0 %v153
    %730 = vmatpush1.msra.mxu0 %v152
    %731 = vmatprep.mubr.f32.mxu0 %v660
    %732 = vmatmul.mubr.f32.gmra.mrb[0].mxu0 %v659
    %v733 = vpop.f32.mrb[0].mxu0
    %v734 = vadd.f32 0.0, %v733
    %v735 = vpop.f32.mrb[0].mxu0
    %v736 = vadd.f32 0.0, %v735
    %737 = vmatprep.mubr.f32.mxu0 %v662
    %738 = vmatmul.mubr.f32.gmra.mrb[0].mxu0 %v661
    %v739 = vpop.f32.mrb[0].mxu0
    %v740 = vadd.f32 0.0, %v739
    %v741 = vpop.f32.mrb[0].mxu0
    %v742 = vadd.f32 0.0, %v741
    %743 = vdwg.mxu0
    %v744 = vsub.f32 %v663, %v734
    %v745 = vsub.f32 %v664, %v736
    %v746 = vsub.f32 %v665, %v740
    %v747 = vsub.f32 %v666, %v742
    %v748 = vmax.f32 %v744, -0.017657414
    %v749 = vmax.f32 %v745, -0.017657414
    %v750 = vmax.f32 %v746, -0.017657414
    %v751 = vmax.f32 %v747, -0.017657414
    %v752 = vmin.f32 %v748, 0.017657414
    %v753 = vmin.f32 %v749, 0.017657414
    %v754 = vmin.f32 %v750, 0.017657414
    %v755 = vmin.f32 %v751, 0.017657414
    %v756 = vsub.f32 %v744, %v752
    %v757 = vsub.f32 %v745, %v753
    %v758 = vsub.f32 %v746, %v754
    %v759 = vsub.f32 %v747, %v755
    %v760 = vsub.f32 %v756, %v647
    %v761 = vsub.f32 %v757, %v648
    %v762 = vsub.f32 %v758, %v649
    %v763 = vsub.f32 %v759, %v650
    %v764 = vmul.f32 %v760, 0.5987786
    %v765 = vmul.f32 %v761, 0.5987786
    %v766 = vmul.f32 %v762, 0.5987786
    %v767 = vmul.f32 %v763, 0.5987786
    %v768 = vadd.f32 %v756, %v764
    %v769 = vadd.f32 %v757, %v765
    %v770 = vadd.f32 %v758, %v766
    %v771 = vadd.f32 %v759, %v767
    %v772 = vadd.f32 %v768, %v221
    %v773 = vadd.f32 %v769, %v223
    %v774 = vadd.f32 %v770, %v227
    %v775 = vadd.f32 %v771, %v229
    %776 = vmatprep.subr.mxu0 %v91
    %777 = vmatpush1.msra.mxu0 %v90
    %778 = vmatprep.subr.mxu0 %v93
    %779 = vmatpush1.msra.mxu0 %v92
    %780 = vmatprep.subr.mxu0 %v95
    %781 = vmatpush1.msra.mxu0 %v94
    %782 = vmatprep.subr.mxu0 %v97
    %783 = vmatpush1.msra.mxu0 %v96
    %784 = vmatprep.subr.mxu0 %v99
    %785 = vmatpush1.msra.mxu0 %v98
    %786 = vmatprep.subr.mxu0 %v101
    %787 = vmatpush1.msra.mxu0 %v100
    %788 = vmatprep.subr.mxu0 %v103
    %789 = vmatpush1.msra.mxu0 %v102
    %790 = vmatprep.subr.mxu0 %v105
    %791 = vmatpush1.msra.mxu0 %v104
    %792 = vmatprep.subr.mxu0 %v107
    %793 = vmatpush1.msra.mxu0 %v106
    %794 = vmatprep.subr.mxu0 %v109
    %795 = vmatpush1.msra.mxu0 %v108
    %796 = vmatprep.subr.mxu0 %v111
    %797 = vmatpush1.msra.mxu0 %v110
    %798 = vmatprep.subr.mxu0 %v113
    %799 = vmatpush1.msra.mxu0 %v112
    %800 = vmatprep.subr.mxu0 %v115
    %801 = vmatpush1.msra.mxu0 %v114
    %802 = vmatprep.subr.mxu0 %v117
    %803 = vmatpush1.msra.mxu0 %v116
    %804 = vmatprep.subr.mxu0 %v119
    %805 = vmatpush1.msra.mxu0 %v118
    %806 = vmatprep.subr.mxu0 %v121
    %807 = vmatpush1.msra.mxu0 %v120
    %808 = vmatprep.subr.mxu0 %v123
    %809 = vmatpush1.msra.mxu0 %v122
    %810 = vmatprep.subr.mxu0 %v125
    %811 = vmatpush1.msra.mxu0 %v124
    %812 = vmatprep.subr.mxu0 %v127
    %813 = vmatpush1.msra.mxu0 %v126
    %814 = vmatprep.subr.mxu0 %v129
    %815 = vmatpush1.msra.mxu0 %v128
    %816 = vmatprep.subr.mxu0 %v131
    %817 = vmatpush1.msra.mxu0 %v130
    %818 = vmatprep.subr.mxu0 %v133
    %819 = vmatpush1.msra.mxu0 %v132
    %820 = vmatprep.subr.mxu0 %v135
    %821 = vmatpush1.msra.mxu0 %v134
    %822 = vmatprep.subr.mxu0 %v137
    %823 = vmatpush1.msra.mxu0 %v136
    %824 = vmatprep.subr.mxu0 %v139
    %825 = vmatpush1.msra.mxu0 %v138
    %826 = vmatprep.subr.mxu0 %v141
    %827 = vmatpush1.msra.mxu0 %v140
    %828 = vmatprep.subr.mxu0 %v143
    %829 = vmatpush1.msra.mxu0 %v142
    %830 = vmatprep.subr.mxu0 %v145
    %831 = vmatpush1.msra.mxu0 %v144
    %832 = vmatprep.subr.mxu0 %v147
    %833 = vmatpush1.msra.mxu0 %v146
    %834 = vmatprep.subr.mxu0 %v149
    %835 = vmatpush1.msra.mxu0 %v148
    %836 = vmatprep.subr.mxu0 %v151
    %837 = vmatpush1.msra.mxu0 %v150
    %838 = vmatprep.subr.mxu0 %v153
    %839 = vmatpush1.msra.mxu0 %v152
    %840 = vmatprep.mubr.f32.mxu0 %v769
    %841 = vmatmul.mubr.f32.gmra.mrb[0].mxu0 %v768
    %v842 = vpop.f32.mrb[0].mxu0
    %v843 = vadd.f32 0.0, %v842
    %v844 = vpop.f32.mrb[0].mxu0
    %v845 = vadd.f32 0.0, %v844
    %846 = vmatprep.mubr.f32.mxu0 %v771
    %847 = vmatmul.mubr.f32.gmra.mrb[0].mxu0 %v770
    %v848 = vpop.f32.mrb[0].mxu0
    %v849 = vadd.f32 0.0, %v848
    %v850 = vpop.f32.mrb[0].mxu0
    %v851 = vadd.f32 0.0, %v850
    %852 = vdwg.mxu0
    %v853 = vsub.f32 %v772, %v843
    %v854 = vsub.f32 %v773, %v845
    %v855 = vsub.f32 %v774, %v849
    %v856 = vsub.f32 %v775, %v851
    %v857 = vmax.f32 %v853, -0.017657414
    %v858 = vmax.f32 %v854, -0.017657414
    %v859 = vmax.f32 %v855, -0.017657414
    %v860 = vmax.f32 %v856, -0.017657414
    %v861 = vmin.f32 %v857, 0.017657414
    %v862 = vmin.f32 %v858, 0.017657414
    %v863 = vmin.f32 %v859, 0.017657414
    %v864 = vmin.f32 %v860, 0.017657414
    %v865 = vsub.f32 %v853, %v861
    %v866 = vsub.f32 %v854, %v862
    %v867 = vsub.f32 %v855, %v863
    %v868 = vsub.f32 %v856, %v864
    %v869 = vsub.f32 %v865, %v756
    %v870 = vsub.f32 %v866, %v757
    %v871 = vsub.f32 %v867, %v758
    %v872 = vsub.f32 %v868, %v759
    %v873 = vmul.f32 %v869, 0.64892334
    %v874 = vmul.f32 %v870, 0.64892334
    %v875 = vmul.f32 %v871, 0.64892334
    %v876 = vmul.f32 %v872, 0.64892334
    %v877 = vadd.f32 %v865, %v873
    %v878 = vadd.f32 %v866, %v874
    %v879 = vadd.f32 %v867, %v875
    %v880 = vadd.f32 %v868, %v876
    %v881 = vadd.f32 %v877, %v221
    %v882 = vadd.f32 %v878, %v223
    %v883 = vadd.f32 %v879, %v227
    %v884 = vadd.f32 %v880, %v229
    %885 = vmatprep.subr.mxu0 %v91
    %886 = vmatpush1.msra.mxu0 %v90
    %887 = vmatprep.subr.mxu0 %v93
    %888 = vmatpush1.msra.mxu0 %v92
    %889 = vmatprep.subr.mxu0 %v95
    %890 = vmatpush1.msra.mxu0 %v94
    %891 = vmatprep.subr.mxu0 %v97
    %892 = vmatpush1.msra.mxu0 %v96
    %893 = vmatprep.subr.mxu0 %v99
    %894 = vmatpush1.msra.mxu0 %v98
    %895 = vmatprep.subr.mxu0 %v101
    %896 = vmatpush1.msra.mxu0 %v100
    %897 = vmatprep.subr.mxu0 %v103
    %898 = vmatpush1.msra.mxu0 %v102
    %899 = vmatprep.subr.mxu0 %v105
    %900 = vmatpush1.msra.mxu0 %v104
    %901 = vmatprep.subr.mxu0 %v107
    %902 = vmatpush1.msra.mxu0 %v106
    %903 = vmatprep.subr.mxu0 %v109
    %904 = vmatpush1.msra.mxu0 %v108
    %905 = vmatprep.subr.mxu0 %v111
    %906 = vmatpush1.msra.mxu0 %v110
    %907 = vmatprep.subr.mxu0 %v113
    %908 = vmatpush1.msra.mxu0 %v112
    %909 = vmatprep.subr.mxu0 %v115
    %910 = vmatpush1.msra.mxu0 %v114
    %911 = vmatprep.subr.mxu0 %v117
    %912 = vmatpush1.msra.mxu0 %v116
    %913 = vmatprep.subr.mxu0 %v119
    %914 = vmatpush1.msra.mxu0 %v118
    %915 = vmatprep.subr.mxu0 %v121
    %916 = vmatpush1.msra.mxu0 %v120
    %917 = vmatprep.subr.mxu0 %v123
    %918 = vmatpush1.msra.mxu0 %v122
    %919 = vmatprep.subr.mxu0 %v125
    %920 = vmatpush1.msra.mxu0 %v124
    %921 = vmatprep.subr.mxu0 %v127
    %922 = vmatpush1.msra.mxu0 %v126
    %923 = vmatprep.subr.mxu0 %v129
    %924 = vmatpush1.msra.mxu0 %v128
    %925 = vmatprep.subr.mxu0 %v131
    %926 = vmatpush1.msra.mxu0 %v130
    %927 = vmatprep.subr.mxu0 %v133
    %928 = vmatpush1.msra.mxu0 %v132
    %929 = vmatprep.subr.mxu0 %v135
    %930 = vmatpush1.msra.mxu0 %v134
    %931 = vmatprep.subr.mxu0 %v137
    %932 = vmatpush1.msra.mxu0 %v136
    %933 = vmatprep.subr.mxu0 %v139
    %934 = vmatpush1.msra.mxu0 %v138
    %935 = vmatprep.subr.mxu0 %v141
    %936 = vmatpush1.msra.mxu0 %v140
    %937 = vmatprep.subr.mxu0 %v143
    %938 = vmatpush1.msra.mxu0 %v142
    %939 = vmatprep.subr.mxu0 %v145
    %940 = vmatpush1.msra.mxu0 %v144
    %941 = vmatprep.subr.mxu0 %v147
    %942 = vmatpush1.msra.mxu0 %v146
    %943 = vmatprep.subr.mxu0 %v149
    %944 = vmatpush1.msra.mxu0 %v148
    %945 = vmatprep.subr.mxu0 %v151
    %946 = vmatpush1.msra.mxu0 %v150
    %947 = vmatprep.subr.mxu0 %v153
    %948 = vmatpush1.msra.mxu0 %v152
    %949 = vmatprep.mubr.f32.mxu0 %v878
    %950 = vmatmul.mubr.f32.gmra.mrb[0].mxu0 %v877
    %v951 = vpop.f32.mrb[0].mxu0
    %v952 = vadd.f32 0.0, %v951
    %v953 = vpop.f32.mrb[0].mxu0
    %v954 = vadd.f32 0.0, %v953
    %955 = vmatprep.mubr.f32.mxu0 %v880
    %956 = vmatmul.mubr.f32.gmra.mrb[0].mxu0 %v879
    %v957 = vpop.f32.mrb[0].mxu0
    %v958 = vadd.f32 0.0, %v957
    %v959 = vpop.f32.mrb[0].mxu0
    %v960 = vadd.f32 0.0, %v959
    %961 = vdwg.mxu0
    %v962 = vsub.f32 %v881, %v952
    %v963 = vsub.f32 %v882, %v954
    %v964 = vsub.f32 %v883, %v958
    %v965 = vsub.f32 %v884, %v960
    %v966 = vmax.f32 %v962, -0.017657414
    %v967 = vmax.f32 %v963, -0.017657414
    %v968 = vmax.f32 %v964, -0.017657414
    %v969 = vmax.f32 %v965, -0.017657414
    %v970 = vmin.f32 %v966, 0.017657414
    %v971 = vmin.f32 %v967, 0.017657414
    %v972 = vmin.f32 %v968, 0.017657414
    %v973 = vmin.f32 %v969, 0.017657414
    %v974 = vsub.f32 %v962, %v970
    %v975 = vsub.f32 %v963, %v971
    %v976 = vsub.f32 %v964, %v972
    %v977 = vsub.f32 %v965, %v973
    %v978 = vsub.f32 %v974, %v865
    %v979 = vsub.f32 %v975, %v866
    %v980 = vsub.f32 %v976, %v867
    %v981 = vsub.f32 %v977, %v868
    %v982 = vmul.f32 %v978, 0.68764585
    %v983 = vmul.f32 %v979, 0.68764585
    %v984 = vmul.f32 %v980, 0.68764585
    %v985 = vmul.f32 %v981, 0.68764585
    %v986 = vadd.f32 %v974, %v982
    %v987 = vadd.f32 %v975, %v983
    %v988 = vadd.f32 %v976, %v984
    %v989 = vadd.f32 %v977, %v985
    %v990 = vadd.f32 %v986, %v221
    %v991 = vadd.f32 %v987, %v223
    %v992 = vadd.f32 %v988, %v227
    %v993 = vadd.f32 %v989, %v229
    %994 = vmatprep.subr.mxu0 %v91
    %995 = vmatpush1.msra.mxu0 %v90
    %996 = vmatprep.subr.mxu0 %v93
    %997 = vmatpush1.msra.mxu0 %v92
    %998 = vmatprep.subr.mxu0 %v95
    %999 = vmatpush1.msra.mxu0 %v94
    %1000 = vmatprep.subr.mxu0 %v97
    %1001 = vmatpush1.msra.mxu0 %v96
    %1002 = vmatprep.subr.mxu0 %v99
    %1003 = vmatpush1.msra.mxu0 %v98
    %1004 = vmatprep.subr.mxu0 %v101
    %1005 = vmatpush1.msra.mxu0 %v100
    %1006 = vmatprep.subr.mxu0 %v103
    %1007 = vmatpush1.msra.mxu0 %v102
    %1008 = vmatprep.subr.mxu0 %v105
    %1009 = vmatpush1.msra.mxu0 %v104
    %1010 = vmatprep.subr.mxu0 %v107
    %1011 = vmatpush1.msra.mxu0 %v106
    %1012 = vmatprep.subr.mxu0 %v109
    %1013 = vmatpush1.msra.mxu0 %v108
    %1014 = vmatprep.subr.mxu0 %v111
    %1015 = vmatpush1.msra.mxu0 %v110
    %1016 = vmatprep.subr.mxu0 %v113
    %1017 = vmatpush1.msra.mxu0 %v112
    %1018 = vmatprep.subr.mxu0 %v115
    %1019 = vmatpush1.msra.mxu0 %v114
    %1020 = vmatprep.subr.mxu0 %v117
    %1021 = vmatpush1.msra.mxu0 %v116
    %1022 = vmatprep.subr.mxu0 %v119
    %1023 = vmatpush1.msra.mxu0 %v118
    %1024 = vmatprep.subr.mxu0 %v121
    %1025 = vmatpush1.msra.mxu0 %v120
    %1026 = vmatprep.subr.mxu0 %v123
    %1027 = vmatpush1.msra.mxu0 %v122
    %1028 = vmatprep.subr.mxu0 %v125
    %1029 = vmatpush1.msra.mxu0 %v124
    %1030 = vmatprep.subr.mxu0 %v127
    %1031 = vmatpush1.msra.mxu0 %v126
    %1032 = vmatprep.subr.mxu0 %v129
    %1033 = vmatpush1.msra.mxu0 %v128
    %1034 = vmatprep.subr.mxu0 %v131
    %1035 = vmatpush1.msra.mxu0 %v130
    %1036 = vmatprep.subr.mxu0 %v133
    %1037 = vmatpush1.msra.mxu0 %v132
    %1038 = vmatprep.subr.mxu0 %v135
    %1039 = vmatpush1.msra.mxu0 %v134
    %1040 = vmatprep.subr.mxu0 %v137
    %1041 = vmatpush1.msra.mxu0 %v136
    %1042 = vmatprep.subr.mxu0 %v139
    %1043 = vmatpush1.msra.mxu0 %v138
    %1044 = vmatprep.subr.mxu0 %v141
    %1045 = vmatpush1.msra.mxu0 %v140
    %1046 = vmatprep.subr.mxu0 %v143
    %1047 = vmatpush1.msra.mxu0 %v142
    %1048 = vmatprep.subr.mxu0 %v145
    %1049 = vmatpush1.msra.mxu0 %v144
    %1050 = vmatprep.subr.mxu0 %v147
    %1051 = vmatpush1.msra.mxu0 %v146
    %1052 = vmatprep.subr.mxu0 %v149
    %1053 = vmatpush1.msra.mxu0 %v148
    %1054 = vmatprep.subr.mxu0 %v151
    %1055 = vmatpush1.msra.mxu0 %v150
    %1056 = vmatprep.subr.mxu0 %v153
    %1057 = vmatpush1.msra.mxu0 %v152
    %1058 = vmatprep.mubr.f32.mxu0 %v987
    %1059 = vmatmul.mubr.f32.gmra.mrb[0].mxu0 %v986
    %v1060 = vpop.f32.mrb[0].mxu0
    %v1061 = vadd.f32 0.0, %v1060
    %v1062 = vpop.f32.mrb[0].mxu0
    %v1063 = vadd.f32 0.0, %v1062
    %1064 = vmatprep.mubr.f32.mxu0 %v989
    %1065 = vmatmul.mubr.f32.gmra.mrb[0].mxu0 %v988
    %v1066 = vpop.f32.mrb[0].mxu0
    %v1067 = vadd.f32 0.0, %v1066
    %v1068 = vpop.f32.mrb[0].mxu0
    %v1069 = vadd.f32 0.0, %v1068
    %1070 = vdwg.mxu0
    %v1071 = vsub.f32 %v990, %v1061
    %v1072 = vsub.f32 %v991, %v1063
    %v1073 = vsub.f32 %v992, %v1067
    %v1074 = vsub.f32 %v993, %v1069
    %v1075 = vmax.f32 %v1071, -0.017657414
    %v1076 = vmax.f32 %v1072, -0.017657414
    %v1077 = vmax.f32 %v1073, -0.017657414
    %v1078 = vmax.f32 %v1074, -0.017657414
    %v1079 = vmin.f32 %v1075, 0.017657414
    %v1080 = vmin.f32 %v1076, 0.017657414
    %v1081 = vmin.f32 %v1077, 0.017657414
    %v1082 = vmin.f32 %v1078, 0.017657414
    %v1083 = vsub.f32 %v1071, %v1079
    %v1084 = vsub.f32 %v1072, %v1080
    %v1085 = vsub.f32 %v1073, %v1081
    %v1086 = vsub.f32 %v1074, %v1082
    %v1087 = vsub.f32 %v1083, %v974
    %v1088 = vsub.f32 %v1084, %v975
    %v1089 = vsub.f32 %v1085, %v976
    %v1090 = vsub.f32 %v1086, %v977
    %v1091 = vmul.f32 %v1087, 0.71849984
    %v1092 = vmul.f32 %v1088, 0.71849984
    %v1093 = vmul.f32 %v1089, 0.71849984
    %v1094 = vmul.f32 %v1090, 0.71849984
    %v1095 = vadd.f32 %v1083, %v1091
    %v1096 = vadd.f32 %v1084, %v1092
    %v1097 = vadd.f32 %v1085, %v1093
    %v1098 = vadd.f32 %v1086, %v1094
    %1099 = vst [vmem:[#allocation8] sm:$0xff] %v1095
    %1100 = vst [vmem:[#allocation8 + $0x8] sm:$0xff] %v1096
    %1101 = vst [vmem:[#allocation8 + $0x10] sm:$0xff] %v1097
    %1102 = vst [vmem:[#allocation8 + $0x18] sm:$0xff] %v1098
    // Predicated region
    $region26: #{tpu_custom_call.1} parent=1 // pred_check
      _
    $region27: #{tpu_custom_call.1} parent=1 // pred_check_branch
      %1104 = sbr.rel (0) target = $region29
    $region28: #{tpu_custom_call.1} parent=1 // pred_region
      %s1106 = ssub.s32 512, 512
      %1107 = vsyncadd [#allocation4], %s1106
      %s1108 = sshll.u32 [#allocation8], 4
      %s1109 = int_to_ptr.vmem [resolvable:$true] %s1108
      %1114 = dma.vmem_to_hbm [thread:$0]  %s1109, 512, %s3, [#allocation4], 256, 256, 16
    $region29: #{tpu_custom_call.1} parent=1 // pred_fallthru
      _
    // Predicated region
    $region30: #{tpu_custom_call.1} parent=1 // pred_check
      _
    $region31: #{tpu_custom_call.1} parent=1 // pred_check_branch
      %1116 = sbr.rel (0) target = $region33
    $region32: #{tpu_custom_call.1} parent=1 // pred_region
      %1117 = dma.done [#allocation4], 512
    $region33: #{tpu_custom_call.1} parent=1 // pred_fallthru
      _
    %1118 = vsyncpa [#allocation3], 1
    %1119 = vsyncpa [#allocation6], 1
    %1120 = vsyncpa [#allocation4], 1

// kernel: tpu_custom_call.1
$region0: #{tpu_custom_call.1}
  #allocation0 [shape = 'u32[]', space=smem, size = 0x4, offset = 0x4, fixed_abs, tag = 'smem constant byte address 0x4 - core index']
  #allocation1 [shape = 'u32[144,128]{1,0:T(1,128)}', space=vmem, size = 0x12000, scoped, tag = 'internal scratch']
  %s0 = inlined_call_operand.hbm [shape: f32[16,128], index: 0, kind: input, shape index: {}]
  %s1 = inlined_call_operand.hbm [shape: f32[128,256], index: 1, kind: input, shape index: {}]
  %s2 = inlined_call_operand.hbm [shape: f32[256,256], index: 2, kind: input, shape index: {}]
  %s3 = inlined_call_operand.hbm [shape: f32[16,256], index: 3, kind: output, shape index: {}]
  %s4 = sld [smem:[#allocation0]]
  $region34: #{tpu_custom_call.1} parent=0
    _
  %s6 = ssub.s32 1, %s4
  %s7 = scalar_select 0, %s6, %s4
  $region1: #{tpu_custom_call.1} parent=0
    #allocation2 [shape = 'u8[8192]{0}', space=vmem, size = 0x2000, scoped, tag = 'input window, operand 0, single buffered']
    #allocation3 [shape = 's32[1]{0}', space=sflag, size = 0x4, scoped, tag = 'scoped memory for tpu_custom_call.1']
    #allocation4 [shape = 's32[1]{0}', space=sflag, size = 0x4, scoped, tag = 'scoped memory for tpu_custom_call.1']
    #allocation5 [shape = 'u8[131072]{0}', space=vmem, size = 0x20000, scoped, tag = 'input window, operand 1, single buffered']
    #allocation6 [shape = 's32[1]{0}', space=sflag, size = 0x4, scoped, tag = 'scoped memory for tpu_custom_call.1']
    #allocation7 [shape = 'u8[262144]{0}', space=vmem, size = 0x40000, scoped, tag = 'input window, operand 2, single buffered']
    #allocation8 [shape = 'u8[16384]{0}', space=vmem, size = 0x4000, scoped, tag = 'output window, operand 0, single buffered']
    %8 = vsyncpa [#allocation3], 0
    %9 = vsyncpa [#allocation6], 0
    %10 = vsyncpa [#allocation4], 0
    // Predicated region
    $region2: #{tpu_custom_call.1} parent=1 // pred_check
      _
    $region3: #{tpu_custom_call.1} parent=1 // pred_check_branch
      %12 = sbr.rel (0) target = $region5
    $region4: #{tpu_custom_call.1} parent=1 // pred_region
      %s14 = ssub.s32 256, 256
      %15 = vsyncadd [#allocation3], %s14
      %s16 = sshll.u32 [#allocation2], 4
      %s17 = int_to_ptr.vmem [resolvable:$true] %s16
      %22 = dma.hbm_to_vmem [thread:$0]  %s0, 256, %s17, [#allocation3], 128, 128, 8
    $region5: #{tpu_custom_call.1} parent=1 // pred_fallthru
      _
    // Predicated region
    $region6: #{tpu_custom_call.1} parent=1 // pred_check
      _
    $region7: #{tpu_custom_call.1} parent=1 // pred_check_branch
      %24 = sbr.rel (0) target = $region9
    $region8: #{tpu_custom_call.1} parent=1 // pred_region
      %s26 = ssub.s32 4096, 4096
      %27 = vsyncadd [#allocation6], %s26
      %s28 = sshll.u32 [#allocation5], 4
      %s29 = int_to_ptr.vmem [resolvable:$true] %s28
      %34 = dma.hbm_to_vmem [thread:$0]  %s1, 4096, %s29, [#allocation6], 256, 256, 16
    $region9: #{tpu_custom_call.1} parent=1 // pred_fallthru
      _
    // Predicated region
    $region10: #{tpu_custom_call.1} parent=1 // pred_check
      _
    $region11: #{tpu_custom_call.1} parent=1 // pred_check_branch
      %36 = sbr.rel (0) target = $region13
    $region12: #{tpu_custom_call.1} parent=1 // pred_region
      %s38 = ssub.s32 8192, 8192
      %39 = vsyncadd [#allocation6], %s38
      %s40 = sshll.u32 [#allocation7], 4
      %s41 = int_to_ptr.vmem [resolvable:$true] %s40
      %46 = dma.hbm_to_vmem [thread:$0]  %s2, 8192, %s41, [#allocation6], 256, 256, 16
    $region13: #{tpu_custom_call.1} parent=1 // pred_fallthru
      _
    // Predicated region
    $region14: #{tpu_custom_call.1} parent=1 // pred_check
      _
    $region15: #{tpu_custom_call.1} parent=1 // pred_check_branch
      %48 = sbr.rel (0) target = $region17
    $region16: #{tpu_custom_call.1} parent=1 // pred_region
      %49 = dma.done [#allocation3], 256
    $region17: #{tpu_custom_call.1} parent=1 // pred_fallthru
      _
    // Predicated region
    $region18: #{tpu_custom_call.1} parent=1 // pred_check
      _
    $region19: #{tpu_custom_call.1} parent=1 // pred_check_branch
      %51 = sbr.rel (0) target = $region21
    $region20: #{tpu_custom_call.1} parent=1 // pred_region
      %52 = dma.done [#allocation6], 4096
    $region21: #{tpu_custom_call.1} parent=1 // pred_fallthru
      _
    // Predicated region
    $region22: #{tpu_custom_call.1} parent=1 // pred_check
      _
    $region23: #{tpu_custom_call.1} parent=1 // pred_check_branch
      %54 = sbr.rel (0) target = $region25
    $region24: #{tpu_custom_call.1} parent=1 // pred_region
      %55 = dma.done [#allocation6], 8192
    $region25: #{tpu_custom_call.1} parent=1 // pred_fallthru
      _
    %v56 = vld [vmem:[#allocation2] sm:$0xff]
    %v57 = vld [vmem:[#allocation2 + $0x8] sm:$0xff]
    %v58 = vld [vmem:[#allocation5] sm:$0xff]
    %v59 = vld [vmem:[#allocation5 + $0x8] sm:$0xff]
    %v60 = vld [vmem:[#allocation5 + $0x10] sm:$0xff]
    %v61 = vld [vmem:[#allocation5 + $0x18] sm:$0xff]
    %v62 = vld [vmem:[#allocation5 + $0x20] sm:$0xff]
    %v63 = vld [vmem:[#allocation5 + $0x28] sm:$0xff]
    %v64 = vld [vmem:[#allocation5 + $0x30] sm:$0xff]
    %v65 = vld [vmem:[#allocation5 + $0x38] sm:$0xff]
    %v66 = vld [vmem:[#allocation5 + $0x40] sm:$0xff]
    %v67 = vld [vmem:[#allocation5 + $0x48] sm:$0xff]
    %v68 = vld [vmem:[#allocation5 + $0x50] sm:$0xff]
    %v69 = vld [vmem:[#allocation5 + $0x58] sm:$0xff]
    %v70 = vld [vmem:[#allocation5 + $0x60] sm:$0xff]
    %v71 = vld [vmem:[#allocation5 + $0x68] sm:$0xff]
    %v72 = vld [vmem:[#allocation5 + $0x70] sm:$0xff]
    %v73 = vld [vmem:[#allocation5 + $0x78] sm:$0xff]
    %v74 = vld [vmem:[#allocation5 + $0x80] sm:$0xff]
    %v75 = vld [vmem:[#allocation5 + $0x88] sm:$0xff]
    %v76 = vld [vmem:[#allocation5 + $0x90] sm:$0xff]
    %v77 = vld [vmem:[#allocation5 + $0x98] sm:$0xff]
    %v78 = vld [vmem:[#allocation5 + $0xa0] sm:$0xff]
    %v79 = vld [vmem:[#allocation5 + $0xa8] sm:$0xff]
    %v80 = vld [vmem:[#allocation5 + $0xb0] sm:$0xff]
    %v81 = vld [vmem:[#allocation5 + $0xb8] sm:$0xff]
    %v82 = vld [vmem:[#allocation5 + $0xc0] sm:$0xff]
    %v83 = vld [vmem:[#allocation5 + $0xc8] sm:$0xff]
    %v84 = vld [vmem:[#allocation5 + $0xd0] sm:$0xff]
    %v85 = vld [vmem:[#allocation5 + $0xd8] sm:$0xff]
    %v86 = vld [vmem:[#allocation5 + $0xe0] sm:$0xff]
    %v87 = vld [vmem:[#allocation5 + $0xe8] sm:$0xff]
    %v88 = vld [vmem:[#allocation5 + $0xf0] sm:$0xff]
    %v89 = vld [vmem:[#allocation5 + $0xf8] sm:$0xff]
    %v90 = vld [vmem:[#allocation7] sm:$0xff]
    %v91 = vld [vmem:[#allocation7 + $0x8] sm:$0xff]
    %v92 = vld [vmem:[#allocation7 + $0x10] sm:$0xff]
    %v93 = vld [vmem:[#allocation7 + $0x18] sm:$0xff]
    %v94 = vld [vmem:[#allocation7 + $0x20] sm:$0xff]
    %v95 = vld [vmem:[#allocation7 + $0x28] sm:$0xff]
    %v96 = vld [vmem:[#allocation7 + $0x30] sm:$0xff]
    %v97 = vld [vmem:[#allocation7 + $0x38] sm:$0xff]
    %v98 = vld [vmem:[#allocation7 + $0x40] sm:$0xff]
    %v99 = vld [vmem:[#allocation7 + $0x48] sm:$0xff]
    %v100 = vld [vmem:[#allocation7 + $0x50] sm:$0xff]
    %v101 = vld [vmem:[#allocation7 + $0x58] sm:$0xff]
    %v102 = vld [vmem:[#allocation7 + $0x60] sm:$0xff]
    %v103 = vld [vmem:[#allocation7 + $0x68] sm:$0xff]
    %v104 = vld [vmem:[#allocation7 + $0x70] sm:$0xff]
    %v105 = vld [vmem:[#allocation7 + $0x78] sm:$0xff]
    %v106 = vld [vmem:[#allocation7 + $0x80] sm:$0xff]
    %v107 = vld [vmem:[#allocation7 + $0x88] sm:$0xff]
    %v108 = vld [vmem:[#allocation7 + $0x90] sm:$0xff]
    %v109 = vld [vmem:[#allocation7 + $0x98] sm:$0xff]
    %v110 = vld [vmem:[#allocation7 + $0xa0] sm:$0xff]
    %v111 = vld [vmem:[#allocation7 + $0xa8] sm:$0xff]
    %v112 = vld [vmem:[#allocation7 + $0xb0] sm:$0xff]
    %v113 = vld [vmem:[#allocation7 + $0xb8] sm:$0xff]
    %v114 = vld [vmem:[#allocation7 + $0xc0] sm:$0xff]
    %v115 = vld [vmem:[#allocation7 + $0xc8] sm:$0xff]
    %v116 = vld [vmem:[#allocation7 + $0xd0] sm:$0xff]
    %v117 = vld [vmem:[#allocation7 + $0xd8] sm:$0xff]
    %v118 = vld [vmem:[#allocation7 + $0xe0] sm:$0xff]
    %v119 = vld [vmem:[#allocation7 + $0xe8] sm:$0xff]
    %v120 = vld [vmem:[#allocation7 + $0xf0] sm:$0xff]
    %v121 = vld [vmem:[#allocation7 + $0xf8] sm:$0xff]
    %v122 = vld [vmem:[#allocation7 + $0x100] sm:$0xff]
    %v123 = vld [vmem:[#allocation7 + $0x108] sm:$0xff]
    %v124 = vld [vmem:[#allocation7 + $0x110] sm:$0xff]
    %v125 = vld [vmem:[#allocation7 + $0x118] sm:$0xff]
    %v126 = vld [vmem:[#allocation7 + $0x120] sm:$0xff]
    %v127 = vld [vmem:[#allocation7 + $0x128] sm:$0xff]
    %v128 = vld [vmem:[#allocation7 + $0x130] sm:$0xff]
    %v129 = vld [vmem:[#allocation7 + $0x138] sm:$0xff]
    %v130 = vld [vmem:[#allocation7 + $0x140] sm:$0xff]
    %v131 = vld [vmem:[#allocation7 + $0x148] sm:$0xff]
    %v132 = vld [vmem:[#allocation7 + $0x150] sm:$0xff]
    %v133 = vld [vmem:[#allocation7 + $0x158] sm:$0xff]
    %v134 = vld [vmem:[#allocation7 + $0x160] sm:$0xff]
    %v135 = vld [vmem:[#allocation7 + $0x168] sm:$0xff]
    %v136 = vld [vmem:[#allocation7 + $0x170] sm:$0xff]
    %v137 = vld [vmem:[#allocation7 + $0x178] sm:$0xff]
    %v138 = vld [vmem:[#allocation7 + $0x180] sm:$0xff]
    %v139 = vld [vmem:[#allocation7 + $0x188] sm:$0xff]
    %v140 = vld [vmem:[#allocation7 + $0x190] sm:$0xff]
    %v141 = vld [vmem:[#allocation7 + $0x198] sm:$0xff]
    %v142 = vld [vmem:[#allocation7 + $0x1a0] sm:$0xff]
    %v143 = vld [vmem:[#allocation7 + $0x1a8] sm:$0xff]
    %v144 = vld [vmem:[#allocation7 + $0x1b0] sm:$0xff]
    %v145 = vld [vmem:[#allocation7 + $0x1b8] sm:$0xff]
    %v146 = vld [vmem:[#allocation7 + $0x1c0] sm:$0xff]
    %v147 = vld [vmem:[#allocation7 + $0x1c8] sm:$0xff]
    %v148 = vld [vmem:[#allocation7 + $0x1d0] sm:$0xff]
    %v149 = vld [vmem:[#allocation7 + $0x1d8] sm:$0xff]
    %v150 = vld [vmem:[#allocation7 + $0x1e0] sm:$0xff]
    %v151 = vld [vmem:[#allocation7 + $0x1e8] sm:$0xff]
    %v152 = vld [vmem:[#allocation7 + $0x1f0] sm:$0xff]
    %v153 = vld [vmem:[#allocation7 + $0x1f8] sm:$0xff]
    %154 = vmatprep.subr.mxu0 %v59
    %155 = vmatpush1.msra.mxu0 %v58
    %156 = vmatprep.subr.mxu0 %v61
    %157 = vmatpush1.msra.mxu0 %v60
    %158 = vmatprep.subr.mxu0 %v63
    %159 = vmatpush1.msra.mxu0 %v62
    %160 = vmatprep.subr.mxu0 %v65
    %161 = vmatpush1.msra.mxu0 %v64
    %162 = vmatprep.subr.mxu0 %v67
    %163 = vmatpush1.msra.mxu0 %v66
    %164 = vmatprep.subr.mxu0 %v69
    %165 = vmatpush1.msra.mxu0 %v68
    %166 = vmatprep.subr.mxu0 %v71
    %167 = vmatpush1.msra.mxu0 %v70
    %168 = vmatprep.subr.mxu0 %v73
    %169 = vmatpush1.msra.mxu0 %v72
    %170 = vmatprep.subr.mxu0 %v75
    %171 = vmatpush1.msra.mxu0 %v74
    %172 = vmatprep.subr.mxu0 %v77
    %173 = vmatpush1.msra.mxu0 %v76
    %174 = vmatprep.subr.mxu0 %v79
    %175 = vmatpush1.msra.mxu0 %v78
    %176 = vmatprep.subr.mxu0 %v81
    %177 = vmatpush1.msra.mxu0 %v80
    %178 = vmatprep.subr.mxu0 %v83
    %179 = vmatpush1.msra.mxu0 %v82
    %180 = vmatprep.subr.mxu0 %v85
    %181 = vmatpush1.msra.mxu0 %v84
    %182 = vmatprep.subr.mxu0 %v87
    %183 = vmatpush1.msra.mxu0 %v86
    %184 = vmatprep.subr.mxu0 %v89
    %185 = vmatpush1.msra.mxu0 %v88
    %186 = vmatprep.subr.mxu0 0.0
    %187 = vmatpush1.msra.mxu0 0.0
    %188 = vmatprep.subr.mxu0 0.0
    %189 = vmatpush1.msra.mxu0 0.0
    %190 = vmatprep.subr.mxu0 0.0
    %191 = vmatpush1.msra.mxu0 0.0
    %192 = vmatprep.subr.mxu0 0.0
    %193 = vmatpush1.msra.mxu0 0.0
    %194 = vmatprep.subr.mxu0 0.0
    %195 = vmatpush1.msra.mxu0 0.0
    %196 = vmatprep.subr.mxu0 0.0
    %197 = vmatpush1.msra.mxu0 0.0
    %198 = vmatprep.subr.mxu0 0.0
    %199 = vmatpush1.msra.mxu0 0.0
    %200 = vmatprep.subr.mxu0 0.0
    %201 = vmatpush1.msra.mxu0 0.0
    %202 = vmatprep.subr.mxu0 0.0
    %203 = vmatpush1.msra.mxu0 0.0
    %204 = vmatprep.subr.mxu0 0.0
    %205 = vmatpush1.msra.mxu0 0.0
    %206 = vmatprep.subr.mxu0 0.0
    %207 = vmatpush1.msra.mxu0 0.0
    %208 = vmatprep.subr.mxu0 0.0
    %209 = vmatpush1.msra.mxu0 0.0
    %210 = vmatprep.subr.mxu0 0.0
    %211 = vmatpush1.msra.mxu0 0.0
    %212 = vmatprep.subr.mxu0 0.0
    %213 = vmatpush1.msra.mxu0 0.0
    %214 = vmatprep.subr.mxu0 0.0
    %215 = vmatpush1.msra.mxu0 0.0
    %216 = vmatprep.subr.mxu0 0.0
    %217 = vmatpush1.msra.mxu0 0.0
    %218 = vmatprep.mubr.f32.mxu0 0.0
    %219 = vmatmul.mubr.f32.gmra.mrb[0].mxu0 %v56
    %v220 = vpop.f32.mrb[0].mxu0
    %v221 = vadd.f32 0.0, %v220
    %v222 = vpop.f32.mrb[0].mxu0
    %v223 = vadd.f32 0.0, %v222
    %224 = vmatprep.mubr.f32.mxu0 0.0
    %225 = vmatmul.mubr.f32.gmra.mrb[0].mxu0 %v57
    %v226 = vpop.f32.mrb[0].mxu0
    %v227 = vadd.f32 0.0, %v226
    %v228 = vpop.f32.mrb[0].mxu0
    %v229 = vadd.f32 0.0, %v228
    %230 = vdwg.mxu0
    %v231 = vadd.f32 %v221, 0.0
    %v232 = vadd.f32 %v223, 0.0
    %v233 = vadd.f32 %v227, 0.0
    %v234 = vadd.f32 %v229, 0.0
    %235 = vmatprep.subr.mxu0 %v91
    %236 = vmatpush1.msra.mxu0 %v90
    %237 = vmatprep.subr.mxu0 %v93
    %238 = vmatpush1.msra.mxu0 %v92
    %239 = vmatprep.subr.mxu0 %v95
    %240 = vmatpush1.msra.mxu0 %v94
    %241 = vmatprep.subr.mxu0 %v97
    %242 = vmatpush1.msra.mxu0 %v96
    %243 = vmatprep.subr.mxu0 %v99
    %244 = vmatpush1.msra.mxu0 %v98
    %245 = vmatprep.subr.mxu0 %v101
    %246 = vmatpush1.msra.mxu0 %v100
    %247 = vmatprep.subr.mxu0 %v103
    %248 = vmatpush1.msra.mxu0 %v102
    %249 = vmatprep.subr.mxu0 %v105
    %250 = vmatpush1.msra.mxu0 %v104
    %251 = vmatprep.subr.mxu0 %v107
    %252 = vmatpush1.msra.mxu0 %v106
    %253 = vmatprep.subr.mxu0 %v109
    %254 = vmatpush1.msra.mxu0 %v108
    %255 = vmatprep.subr.mxu0 %v111
    %256 = vmatpush1.msra.mxu0 %v110
    %257 = vmatprep.subr.mxu0 %v113
    %258 = vmatpush1.msra.mxu0 %v112
    %259 = vmatprep.subr.mxu0 %v115
    %260 = vmatpush1.msra.mxu0 %v114
    %261 = vmatprep.subr.mxu0 %v117
    %262 = vmatpush1.msra.mxu0 %v116
    %263 = vmatprep.subr.mxu0 %v119
    %264 = vmatpush1.msra.mxu0 %v118
    %265 = vmatprep.subr.mxu0 %v121
    %266 = vmatpush1.msra.mxu0 %v120
    %267 = vmatprep.subr.mxu0 %v123
    %268 = vmatpush1.msra.mxu0 %v122
    %269 = vmatprep.subr.mxu0 %v125
    %270 = vmatpush1.msra.mxu0 %v124
    %271 = vmatprep.subr.mxu0 %v127
    %272 = vmatpush1.msra.mxu0 %v126
    %273 = vmatprep.subr.mxu0 %v129
    %274 = vmatpush1.msra.mxu0 %v128
    %275 = vmatprep.subr.mxu0 %v131
    %276 = vmatpush1.msra.mxu0 %v130
    %277 = vmatprep.subr.mxu0 %v133
    %278 = vmatpush1.msra.mxu0 %v132
    %279 = vmatprep.subr.mxu0 %v135
    %280 = vmatpush1.msra.mxu0 %v134
    %281 = vmatprep.subr.mxu0 %v137
    %282 = vmatpush1.msra.mxu0 %v136
    %283 = vmatprep.subr.mxu0 %v139
    %284 = vmatpush1.msra.mxu0 %v138
    %285 = vmatprep.subr.mxu0 %v141
    %286 = vmatpush1.msra.mxu0 %v140
    %287 = vmatprep.subr.mxu0 %v143
    %288 = vmatpush1.msra.mxu0 %v142
    %289 = vmatprep.subr.mxu0 %v145
    %290 = vmatpush1.msra.mxu0 %v144
    %291 = vmatprep.subr.mxu0 %v147
    %292 = vmatpush1.msra.mxu0 %v146
    %293 = vmatprep.subr.mxu0 %v149
    %294 = vmatpush1.msra.mxu0 %v148
    %295 = vmatprep.subr.mxu0 %v151
    %296 = vmatpush1.msra.mxu0 %v150
    %297 = vmatprep.subr.mxu0 %v153
    %298 = vmatpush1.msra.mxu0 %v152
    %299 = vmatprep.mubr.f32.mxu0 0.0
    %300 = vmatmul.mubr.f32.gmra.mrb[0].mxu0 0.0
    %v301 = vpop.f32.mrb[0].mxu0
    %v302 = vadd.f32 0.0, %v301
    %v303 = vpop.f32.mrb[0].mxu0
    %v304 = vadd.f32 0.0, %v303
    %305 = vmatprep.mubr.f32.mxu0 0.0
    %306 = vmatmul.mubr.f32.gmra.mrb[0].mxu0 0.0
    %v307 = vpop.f32.mrb[0].mxu0
    %v308 = vadd.f32 0.0, %v307
    %v309 = vpop.f32.mrb[0].mxu0
    %v310 = vadd.f32 0.0, %v309
    %311 = vdwg.mxu0
    %v312 = vsub.f32 %v231, %v302
    %v313 = vsub.f32 %v232, %v304
    %v314 = vsub.f32 %v233, %v308
    %v315 = vsub.f32 %v234, %v310
    %v316 = vmax.f32 %v312, -0.017657414
    %v317 = vmax.f32 %v313, -0.017657414
    %v318 = vmax.f32 %v314, -0.017657414
    %v319 = vmax.f32 %v315, -0.017657414
    %v320 = vmin.f32 %v316, 0.017657414
    %v321 = vmin.f32 %v317, 0.017657414
    %v322 = vmin.f32 %v318, 0.017657414
    %v323 = vmin.f32 %v319, 0.017657414
    %v324 = vsub.f32 %v312, %v320
    %v325 = vsub.f32 %v313, %v321
    %v326 = vsub.f32 %v314, %v322
    %v327 = vsub.f32 %v315, %v323
    %v328 = vmul.f32 %v324, 0.0
    %v329 = vmul.f32 %v325, 0.0
    %v330 = vmul.f32 %v326, 0.0
    %v331 = vmul.f32 %v327, 0.0
    %v332 = vadd.f32 %v324, %v328
    %v333 = vadd.f32 %v325, %v329
    %v334 = vadd.f32 %v326, %v330
    %v335 = vadd.f32 %v327, %v331
    %v336 = vadd.f32 %v332, %v221
    %v337 = vadd.f32 %v333, %v223
    %v338 = vadd.f32 %v334, %v227
    %v339 = vadd.f32 %v335, %v229
    %340 = vmatprep.subr.mxu0 %v91
    %341 = vmatpush1.msra.mxu0 %v90
    %342 = vmatprep.subr.mxu0 %v93
    %343 = vmatpush1.msra.mxu0 %v92
    %344 = vmatprep.subr.mxu0 %v95
    %345 = vmatpush1.msra.mxu0 %v94
    %346 = vmatprep.subr.mxu0 %v97
    %347 = vmatpush1.msra.mxu0 %v96
    %348 = vmatprep.subr.mxu0 %v99
    %349 = vmatpush1.msra.mxu0 %v98
    %350 = vmatprep.subr.mxu0 %v101
    %351 = vmatpush1.msra.mxu0 %v100
    %352 = vmatprep.subr.mxu0 %v103
    %353 = vmatpush1.msra.mxu0 %v102
    %354 = vmatprep.subr.mxu0 %v105
    %355 = vmatpush1.msra.mxu0 %v104
    %356 = vmatprep.subr.mxu0 %v107
    %357 = vmatpush1.msra.mxu0 %v106
    %358 = vmatprep.subr.mxu0 %v109
    %359 = vmatpush1.msra.mxu0 %v108
    %360 = vmatprep.subr.mxu0 %v111
    %361 = vmatpush1.msra.mxu0 %v110
    %362 = vmatprep.subr.mxu0 %v113
    %363 = vmatpush1.msra.mxu0 %v112
    %364 = vmatprep.subr.mxu0 %v115
    %365 = vmatpush1.msra.mxu0 %v114
    %366 = vmatprep.subr.mxu0 %v117
    %367 = vmatpush1.msra.mxu0 %v116
    %368 = vmatprep.subr.mxu0 %v119
    %369 = vmatpush1.msra.mxu0 %v118
    %370 = vmatprep.subr.mxu0 %v121
    %371 = vmatpush1.msra.mxu0 %v120
    %372 = vmatprep.subr.mxu0 %v123
    %373 = vmatpush1.msra.mxu0 %v122
    %374 = vmatprep.subr.mxu0 %v125
    %375 = vmatpush1.msra.mxu0 %v124
    %376 = vmatprep.subr.mxu0 %v127
    %377 = vmatpush1.msra.mxu0 %v126
    %378 = vmatprep.subr.mxu0 %v129
    %379 = vmatpush1.msra.mxu0 %v128
    %380 = vmatprep.subr.mxu0 %v131
    %381 = vmatpush1.msra.mxu0 %v130
    %382 = vmatprep.subr.mxu0 %v133
    %383 = vmatpush1.msra.mxu0 %v132
    %384 = vmatprep.subr.mxu0 %v135
    %385 = vmatpush1.msra.mxu0 %v134
    %386 = vmatprep.subr.mxu0 %v137
    %387 = vmatpush1.msra.mxu0 %v136
    %388 = vmatprep.subr.mxu0 %v139
    %389 = vmatpush1.msra.mxu0 %v138
    %390 = vmatprep.subr.mxu0 %v141
    %391 = vmatpush1.msra.mxu0 %v140
    %392 = vmatprep.subr.mxu0 %v143
    %393 = vmatpush1.msra.mxu0 %v142
    %394 = vmatprep.subr.mxu0 %v145
    %395 = vmatpush1.msra.mxu0 %v144
    %396 = vmatprep.subr.mxu0 %v147
    %397 = vmatpush1.msra.mxu0 %v146
    %398 = vmatprep.subr.mxu0 %v149
    %399 = vmatpush1.msra.mxu0 %v148
    %400 = vmatprep.subr.mxu0 %v151
    %401 = vmatpush1.msra.mxu0 %v150
    %402 = vmatprep.subr.mxu0 %v153
    %403 = vmatpush1.msra.mxu0 %v152
    %404 = vmatprep.mubr.f32.mxu0 %v333
    %405 = vmatmul.mubr.f32.gmra.mrb[0].mxu0 %v332
    %v406 = vpop.f32.mrb[0].mxu0
    %v407 = vadd.f32 0.0, %v406
    %v408 = vpop.f32.mrb[0].mxu0
    %v409 = vadd.f32 0.0, %v408
    %410 = vmatprep.mubr.f32.mxu0 %v335
    %411 = vmatmul.mubr.f32.gmra.mrb[0].mxu0 %v334
    %v412 = vpop.f32.mrb[0].mxu0
    %v413 = vadd.f32 0.0, %v412
    %v414 = vpop.f32.mrb[0].mxu0
    %v415 = vadd.f32 0.0, %v414
    %416 = vdwg.mxu0
    %v417 = vsub.f32 %v336, %v407
    %v418 = vsub.f32 %v337, %v409
    %v419 = vsub.f32 %v338, %v413
    %v420 = vsub.f32 %v339, %v415
    %v421 = vmax.f32 %v417, -0.017657414
    %v422 = vmax.f32 %v418, -0.017657414
    %v423 = vmax.f32 %v419, -0.017657414
    %v424 = vmax.f32 %v420, -0.017657414
    %v425 = vmin.f32 %v421, 0.017657414
    %v426 = vmin.f32 %v422, 0.017657414
    %v427 = vmin.f32 %v423, 0.017657414
    %v428 = vmin.f32 %v424, 0.017657414
    %v429 = vsub.f32 %v417, %v425
    %v430 = vsub.f32 %v418, %v426
    %v431 = vsub.f32 %v419, %v427
    %v432 = vsub.f32 %v420, %v428
    %v433 = vsub.f32 %v429, %v324
    %v434 = vsub.f32 %v430, %v325
    %v435 = vsub.f32 %v431, %v326
    %v436 = vsub.f32 %v432, %v327
    %v437 = vmul.f32 %v433, 0.2817535
    %v438 = vmul.f32 %v434, 0.2817535
    %v439 = vmul.f32 %v435, 0.2817535
    %v440 = vmul.f32 %v436, 0.2817535
    %v441 = vadd.f32 %v429, %v437
    %v442 = vadd.f32 %v430, %v438
    %v443 = vadd.f32 %v431, %v439
    %v444 = vadd.f32 %v432, %v440
    %v445 = vadd.f32 %v441, %v221
    %v446 = vadd.f32 %v442, %v223
    %v447 = vadd.f32 %v443, %v227
    %v448 = vadd.f32 %v444, %v229
    %449 = vmatprep.subr.mxu0 %v91
    %450 = vmatpush1.msra.mxu0 %v90
    %451 = vmatprep.subr.mxu0 %v93
    %452 = vmatpush1.msra.mxu0 %v92
    %453 = vmatprep.subr.mxu0 %v95
    %454 = vmatpush1.msra.mxu0 %v94
    %455 = vmatprep.subr.mxu0 %v97
    %456 = vmatpush1.msra.mxu0 %v96
    %457 = vmatprep.subr.mxu0 %v99
    %458 = vmatpush1.msra.mxu0 %v98
    %459 = vmatprep.subr.mxu0 %v101
    %460 = vmatpush1.msra.mxu0 %v100
    %461 = vmatprep.subr.mxu0 %v103
    %462 = vmatpush1.msra.mxu0 %v102
    %463 = vmatprep.subr.mxu0 %v105
    %464 = vmatpush1.msra.mxu0 %v104
    %465 = vmatprep.subr.mxu0 %v107
    %466 = vmatpush1.msra.mxu0 %v106
    %467 = vmatprep.subr.mxu0 %v109
    %468 = vmatpush1.msra.mxu0 %v108
    %469 = vmatprep.subr.mxu0 %v111
    %470 = vmatpush1.msra.mxu0 %v110
    %471 = vmatprep.subr.mxu0 %v113
    %472 = vmatpush1.msra.mxu0 %v112
    %473 = vmatprep.subr.mxu0 %v115
    %474 = vmatpush1.msra.mxu0 %v114
    %475 = vmatprep.subr.mxu0 %v117
    %476 = vmatpush1.msra.mxu0 %v116
    %477 = vmatprep.subr.mxu0 %v119
    %478 = vmatpush1.msra.mxu0 %v118
    %479 = vmatprep.subr.mxu0 %v121
    %480 = vmatpush1.msra.mxu0 %v120
    %481 = vmatprep.subr.mxu0 %v123
    %482 = vmatpush1.msra.mxu0 %v122
    %483 = vmatprep.subr.mxu0 %v125
    %484 = vmatpush1.msra.mxu0 %v124
    %485 = vmatprep.subr.mxu0 %v127
    %486 = vmatpush1.msra.mxu0 %v126
    %487 = vmatprep.subr.mxu0 %v129
    %488 = vmatpush1.msra.mxu0 %v128
    %489 = vmatprep.subr.mxu0 %v131
    %490 = vmatpush1.msra.mxu0 %v130
    %491 = vmatprep.subr.mxu0 %v133
    %492 = vmatpush1.msra.mxu0 %v132
    %493 = vmatprep.subr.mxu0 %v135
    %494 = vmatpush1.msra.mxu0 %v134
    %495 = vmatprep.subr.mxu0 %v137
    %496 = vmatpush1.msra.mxu0 %v136
    %497 = vmatprep.subr.mxu0 %v139
    %498 = vmatpush1.msra.mxu0 %v138
    %499 = vmatprep.subr.mxu0 %v141
    %500 = vmatpush1.msra.mxu0 %v140
    %501 = vmatprep.subr.mxu0 %v143
    %502 = vmatpush1.msra.mxu0 %v142
    %503 = vmatprep.subr.mxu0 %v145
    %504 = vmatpush1.msra.mxu0 %v144
    %505 = vmatprep.subr.mxu0 %v147
    %506 = vmatpush1.msra.mxu0 %v146
    %507 = vmatprep.subr.mxu0 %v149
    %508 = vmatpush1.msra.mxu0 %v148
    %509 = vmatprep.subr.mxu0 %v151
    %510 = vmatpush1.msra.mxu0 %v150
    %511 = vmatprep.subr.mxu0 %v153
    %512 = vmatpush1.msra.mxu0 %v152
    %513 = vmatprep.mubr.f32.mxu0 %v442
    %514 = vmatmul.mubr.f32.gmra.mrb[0].mxu0 %v441
    %v515 = vpop.f32.mrb[0].mxu0
    %v516 = vadd.f32 0.0, %v515
    %v517 = vpop.f32.mrb[0].mxu0
    %v518 = vadd.f32 0.0, %v517
    %519 = vmatprep.mubr.f32.mxu0 %v444
    %520 = vmatmul.mubr.f32.gmra.mrb[0].mxu0 %v443
    %v521 = vpop.f32.mrb[0].mxu0
    %v522 = vadd.f32 0.0, %v521
    %v523 = vpop.f32.mrb[0].mxu0
    %v524 = vadd.f32 0.0, %v523
    %525 = vdwg.mxu0
    %v526 = vsub.f32 %v445, %v516
    %v527 = vsub.f32 %v446, %v518
    %v528 = vsub.f32 %v447, %v522
    %v529 = vsub.f32 %v448, %v524
    %v530 = vmax.f32 %v526, -0.017657414
    %v531 = vmax.f32 %v527, -0.017657414
    %v532 = vmax.f32 %v528, -0.017657414
    %v533 = vmax.f32 %v529, -0.017657414
    %v534 = vmin.f32 %v530, 0.017657414
    %v535 = vmin.f32 %v531, 0.017657414
    %v536 = vmin.f32 %v532, 0.017657414
    %v537 = vmin.f32 %v533, 0.017657414
    %v538 = vsub.f32 %v526, %v534
    %v539 = vsub.f32 %v527, %v535
    %v540 = vsub.f32 %v528, %v536
    %v541 = vsub.f32 %v529, %v537
    %v542 = vsub.f32 %v538, %v429
    %v543 = vsub.f32 %v539, %v430
    %v544 = vsub.f32 %v540, %v431
    %v545 = vsub.f32 %v541, %v432
    %v546 = vmul.f32 %v542, 0.43404278
    %v547 = vmul.f32 %v543, 0.43404278
    %v548 = vmul.f32 %v544, 0.43404278
    %v549 = vmul.f32 %v545, 0.43404278
    %v550 = vadd.f32 %v538, %v546
    %v551 = vadd.f32 %v539, %v547
    %v552 = vadd.f32 %v540, %v548
    %v553 = vadd.f32 %v541, %v549
    %v554 = vadd.f32 %v550, %v221
    %v555 = vadd.f32 %v551, %v223
    %v556 = vadd.f32 %v552, %v227
    %v557 = vadd.f32 %v553, %v229
    %558 = vmatprep.subr.mxu0 %v91
    %559 = vmatpush1.msra.mxu0 %v90
    %560 = vmatprep.subr.mxu0 %v93
    %561 = vmatpush1.msra.mxu0 %v92
    %562 = vmatprep.subr.mxu0 %v95
    %563 = vmatpush1.msra.mxu0 %v94
    %564 = vmatprep.subr.mxu0 %v97
    %565 = vmatpush1.msra.mxu0 %v96
    %566 = vmatprep.subr.mxu0 %v99
    %567 = vmatpush1.msra.mxu0 %v98
    %568 = vmatprep.subr.mxu0 %v101
    %569 = vmatpush1.msra.mxu0 %v100
    %570 = vmatprep.subr.mxu0 %v103
    %571 = vmatpush1.msra.mxu0 %v102
    %572 = vmatprep.subr.mxu0 %v105
    %573 = vmatpush1.msra.mxu0 %v104
    %574 = vmatprep.subr.mxu0 %v107
    %575 = vmatpush1.msra.mxu0 %v106
    %576 = vmatprep.subr.mxu0 %v109
    %577 = vmatpush1.msra.mxu0 %v108
    %578 = vmatprep.subr.mxu0 %v111
    %579 = vmatpush1.msra.mxu0 %v110
    %580 = vmatprep.subr.mxu0 %v113
    %581 = vmatpush1.msra.mxu0 %v112
    %582 = vmatprep.subr.mxu0 %v115
    %583 = vmatpush1.msra.mxu0 %v114
    %584 = vmatprep.subr.mxu0 %v117
    %585 = vmatpush1.msra.mxu0 %v116
    %586 = vmatprep.subr.mxu0 %v119
    %587 = vmatpush1.msra.mxu0 %v118
    %588 = vmatprep.subr.mxu0 %v121
    %589 = vmatpush1.msra.mxu0 %v120
    %590 = vmatprep.subr.mxu0 %v123
    %591 = vmatpush1.msra.mxu0 %v122
    %592 = vmatprep.subr.mxu0 %v125
    %593 = vmatpush1.msra.mxu0 %v124
    %594 = vmatprep.subr.mxu0 %v127
    %595 = vmatpush1.msra.mxu0 %v126
    %596 = vmatprep.subr.mxu0 %v129
    %597 = vmatpush1.msra.mxu0 %v128
    %598 = vmatprep.subr.mxu0 %v131
    %599 = vmatpush1.msra.mxu0 %v130
    %600 = vmatprep.subr.mxu0 %v133
    %601 = vmatpush1.msra.mxu0 %v132
    %602 = vmatprep.subr.mxu0 %v135
    %603 = vmatpush1.msra.mxu0 %v134
    %604 = vmatprep.subr.mxu0 %v137
    %605 = vmatpush1.msra.mxu0 %v136
    %606 = vmatprep.subr.mxu0 %v139
    %607 = vmatpush1.msra.mxu0 %v138
    %608 = vmatprep.subr.mxu0 %v141
    %609 = vmatpush1.msra.mxu0 %v140
    %610 = vmatprep.subr.mxu0 %v143
    %611 = vmatpush1.msra.mxu0 %v142
    %612 = vmatprep.subr.mxu0 %v145
    %613 = vmatpush1.msra.mxu0 %v144
    %614 = vmatprep.subr.mxu0 %v147
    %615 = vmatpush1.msra.mxu0 %v146
    %616 = vmatprep.subr.mxu0 %v149
    %617 = vmatpush1.msra.mxu0 %v148
    %618 = vmatprep.subr.mxu0 %v151
    %619 = vmatpush1.msra.mxu0 %v150
    %620 = vmatprep.subr.mxu0 %v153
    %621 = vmatpush1.msra.mxu0 %v152
    %622 = vmatprep.mubr.f32.mxu0 %v551
    %623 = vmatmul.mubr.f32.gmra.mrb[0].mxu0 %v550
    %v624 = vpop.f32.mrb[0].mxu0
    %v625 = vadd.f32 0.0, %v624
    %v626 = vpop.f32.mrb[0].mxu0
    %v627 = vadd.f32 0.0, %v626
    %628 = vmatprep.mubr.f32.mxu0 %v553
    %629 = vmatmul.mubr.f32.gmra.mrb[0].mxu0 %v552
    %v630 = vpop.f32.mrb[0].mxu0
    %v631 = vadd.f32 0.0, %v630
    %v632 = vpop.f32.mrb[0].mxu0
    %v633 = vadd.f32 0.0, %v632
    %634 = vdwg.mxu0
    %v635 = vsub.f32 %v554, %v625
    %v636 = vsub.f32 %v555, %v627
    %v637 = vsub.f32 %v556, %v631
    %v638 = vsub.f32 %v557, %v633
    %v639 = vmax.f32 %v635, -0.017657414
    %v640 = vmax.f32 %v636, -0.017657414
    %v641 = vmax.f32 %v637, -0.017657414
    %v642 = vmax.f32 %v638, -0.017657414
    %v643 = vmin.f32 %v639, 0.017657414
    %v644 = vmin.f32 %v640, 0.017657414
    %v645 = vmin.f32 %v641, 0.017657414
    %v646 = vmin.f32 %v642, 0.017657414
    %v647 = vsub.f32 %v635, %v643
    %v648 = vsub.f32 %v636, %v644
    %v649 = vsub.f32 %v637, %v645
    %v650 = vsub.f32 %v638, %v646
    %v651 = vsub.f32 %v647, %v538
    %v652 = vsub.f32 %v648, %v539
    %v653 = vsub.f32 %v649, %v540
    %v654 = vsub.f32 %v650, %v541
    %v655 = vmul.f32 %v651, 0.5310638
    %v656 = vmul.f32 %v652, 0.5310638
    %v657 = vmul.f32 %v653, 0.5310638
    %v658 = vmul.f32 %v654, 0.5310638
    %v659 = vadd.f32 %v647, %v655
    %v660 = vadd.f32 %v648, %v656
    %v661 = vadd.f32 %v649, %v657
    %v662 = vadd.f32 %v650, %v658
    %v663 = vadd.f32 %v659, %v221
    %v664 = vadd.f32 %v660, %v223
    %v665 = vadd.f32 %v661, %v227
    %v666 = vadd.f32 %v662, %v229
    %667 = vmatprep.subr.mxu0 %v91
    %668 = vmatpush1.msra.mxu0 %v90
    %669 = vmatprep.subr.mxu0 %v93
    %670 = vmatpush1.msra.mxu0 %v92
    %671 = vmatprep.subr.mxu0 %v95
    %672 = vmatpush1.msra.mxu0 %v94
    %673 = vmatprep.subr.mxu0 %v97
    %674 = vmatpush1.msra.mxu0 %v96
    %675 = vmatprep.subr.mxu0 %v99
    %676 = vmatpush1.msra.mxu0 %v98
    %677 = vmatprep.subr.mxu0 %v101
    %678 = vmatpush1.msra.mxu0 %v100
    %679 = vmatprep.subr.mxu0 %v103
    %680 = vmatpush1.msra.mxu0 %v102
    %681 = vmatprep.subr.mxu0 %v105
    %682 = vmatpush1.msra.mxu0 %v104
    %683 = vmatprep.subr.mxu0 %v107
    %684 = vmatpush1.msra.mxu0 %v106
    %685 = vmatprep.subr.mxu0 %v109
    %686 = vmatpush1.msra.mxu0 %v108
    %687 = vmatprep.subr.mxu0 %v111
    %688 = vmatpush1.msra.mxu0 %v110
    %689 = vmatprep.subr.mxu0 %v113
    %690 = vmatpush1.msra.mxu0 %v112
    %691 = vmatprep.subr.mxu0 %v115
    %692 = vmatpush1.msra.mxu0 %v114
    %693 = vmatprep.subr.mxu0 %v117
    %694 = vmatpush1.msra.mxu0 %v116
    %695 = vmatprep.subr.mxu0 %v119
    %696 = vmatpush1.msra.mxu0 %v118
    %697 = vmatprep.subr.mxu0 %v121
    %698 = vmatpush1.msra.mxu0 %v120
    %699 = vmatprep.subr.mxu0 %v123
    %700 = vmatpush1.msra.mxu0 %v122
    %701 = vmatprep.subr.mxu0 %v125
    %702 = vmatpush1.msra.mxu0 %v124
    %703 = vmatprep.subr.mxu0 %v127
    %704 = vmatpush1.msra.mxu0 %v126
    %705 = vmatprep.subr.mxu0 %v129
    %706 = vmatpush1.msra.mxu0 %v128
    %707 = vmatprep.subr.mxu0 %v131
    %708 = vmatpush1.msra.mxu0 %v130
    %709 = vmatprep.subr.mxu0 %v133
    %710 = vmatpush1.msra.mxu0 %v132
    %711 = vmatprep.subr.mxu0 %v135
    %712 = vmatpush1.msra.mxu0 %v134
    %713 = vmatprep.subr.mxu0 %v137
    %714 = vmatpush1.msra.mxu0 %v136
    %715 = vmatprep.subr.mxu0 %v139
    %716 = vmatpush1.msra.mxu0 %v138
    %717 = vmatprep.subr.mxu0 %v141
    %718 = vmatpush1.msra.mxu0 %v140
    %719 = vmatprep.subr.mxu0 %v143
    %720 = vmatpush1.msra.mxu0 %v142
    %721 = vmatprep.subr.mxu0 %v145
    %722 = vmatpush1.msra.mxu0 %v144
    %723 = vmatprep.subr.mxu0 %v147
    %724 = vmatpush1.msra.mxu0 %v146
    %725 = vmatprep.subr.mxu0 %v149
    %726 = vmatpush1.msra.mxu0 %v148
    %727 = vmatprep.subr.mxu0 %v151
    %728 = vmatpush1.msra.mxu0 %v150
    %729 = vmatprep.subr.mxu0 %v153
    %730 = vmatpush1.msra.mxu0 %v152
    %731 = vmatprep.mubr.f32.mxu0 %v660
    %732 = vmatmul.mubr.f32.gmra.mrb[0].mxu0 %v659
    %v733 = vpop.f32.mrb[0].mxu0
    %v734 = vadd.f32 0.0, %v733
    %v735 = vpop.f32.mrb[0].mxu0
    %v736 = vadd.f32 0.0, %v735
    %737 = vmatprep.mubr.f32.mxu0 %v662
    %738 = vmatmul.mubr.f32.gmra.mrb[0].mxu0 %v661
    %v739 = vpop.f32.mrb[0].mxu0
    %v740 = vadd.f32 0.0, %v739
    %v741 = vpop.f32.mrb[0].mxu0
    %v742 = vadd.f32 0.0, %v741
    %743 = vdwg.mxu0
    %v744 = vsub.f32 %v663, %v734
    %v745 = vsub.f32 %v664, %v736
    %v746 = vsub.f32 %v665, %v740
    %v747 = vsub.f32 %v666, %v742
    %v748 = vmax.f32 %v744, -0.017657414
    %v749 = vmax.f32 %v745, -0.017657414
    %v750 = vmax.f32 %v746, -0.017657414
    %v751 = vmax.f32 %v747, -0.017657414
    %v752 = vmin.f32 %v748, 0.017657414
    %v753 = vmin.f32 %v749, 0.017657414
    %v754 = vmin.f32 %v750, 0.017657414
    %v755 = vmin.f32 %v751, 0.017657414
    %v756 = vsub.f32 %v744, %v752
    %v757 = vsub.f32 %v745, %v753
    %v758 = vsub.f32 %v746, %v754
    %v759 = vsub.f32 %v747, %v755
    %v760 = vsub.f32 %v756, %v647
    %v761 = vsub.f32 %v757, %v648
    %v762 = vsub.f32 %v758, %v649
    %v763 = vsub.f32 %v759, %v650
    %v764 = vmul.f32 %v760, 0.5987786
    %v765 = vmul.f32 %v761, 0.5987786
    %v766 = vmul.f32 %v762, 0.5987786
    %v767 = vmul.f32 %v763, 0.5987786
    %v768 = vadd.f32 %v756, %v764
    %v769 = vadd.f32 %v757, %v765
    %v770 = vadd.f32 %v758, %v766
    %v771 = vadd.f32 %v759, %v767
    %v772 = vadd.f32 %v768, %v221
    %v773 = vadd.f32 %v769, %v223
    %v774 = vadd.f32 %v770, %v227
    %v775 = vadd.f32 %v771, %v229
    %776 = vmatprep.subr.mxu0 %v91
    %777 = vmatpush1.msra.mxu0 %v90
    %778 = vmatprep.subr.mxu0 %v93
    %779 = vmatpush1.msra.mxu0 %v92
    %780 = vmatprep.subr.mxu0 %v95
    %781 = vmatpush1.msra.mxu0 %v94
    %782 = vmatprep.subr.mxu0 %v97
    %783 = vmatpush1.msra.mxu0 %v96
    %784 = vmatprep.subr.mxu0 %v99
    %785 = vmatpush1.msra.mxu0 %v98
    %786 = vmatprep.subr.mxu0 %v101
    %787 = vmatpush1.msra.mxu0 %v100
    %788 = vmatprep.subr.mxu0 %v103
    %789 = vmatpush1.msra.mxu0 %v102
    %790 = vmatprep.subr.mxu0 %v105
    %791 = vmatpush1.msra.mxu0 %v104
    %792 = vmatprep.subr.mxu0 %v107
    %793 = vmatpush1.msra.mxu0 %v106
    %794 = vmatprep.subr.mxu0 %v109
    %795 = vmatpush1.msra.mxu0 %v108
    %796 = vmatprep.subr.mxu0 %v111
    %797 = vmatpush1.msra.mxu0 %v110
    %798 = vmatprep.subr.mxu0 %v113
    %799 = vmatpush1.msra.mxu0 %v112
    %800 = vmatprep.subr.mxu0 %v115
    %801 = vmatpush1.msra.mxu0 %v114
    %802 = vmatprep.subr.mxu0 %v117
    %803 = vmatpush1.msra.mxu0 %v116
    %804 = vmatprep.subr.mxu0 %v119
    %805 = vmatpush1.msra.mxu0 %v118
    %806 = vmatprep.subr.mxu0 %v121
    %807 = vmatpush1.msra.mxu0 %v120
    %808 = vmatprep.subr.mxu0 %v123
    %809 = vmatpush1.msra.mxu0 %v122
    %810 = vmatprep.subr.mxu0 %v125
    %811 = vmatpush1.msra.mxu0 %v124
    %812 = vmatprep.subr.mxu0 %v127
    %813 = vmatpush1.msra.mxu0 %v126
    %814 = vmatprep.subr.mxu0 %v129
    %815 = vmatpush1.msra.mxu0 %v128
    %816 = vmatprep.subr.mxu0 %v131
    %817 = vmatpush1.msra.mxu0 %v130
    %818 = vmatprep.subr.mxu0 %v133
    %819 = vmatpush1.msra.mxu0 %v132
    %820 = vmatprep.subr.mxu0 %v135
    %821 = vmatpush1.msra.mxu0 %v134
    %822 = vmatprep.subr.mxu0 %v137
    %823 = vmatpush1.msra.mxu0 %v136
    %824 = vmatprep.subr.mxu0 %v139
    %825 = vmatpush1.msra.mxu0 %v138
    %826 = vmatprep.subr.mxu0 %v141
    %827 = vmatpush1.msra.mxu0 %v140
    %828 = vmatprep.subr.mxu0 %v143
    %829 = vmatpush1.msra.mxu0 %v142
    %830 = vmatprep.subr.mxu0 %v145
    %831 = vmatpush1.msra.mxu0 %v144
    %832 = vmatprep.subr.mxu0 %v147
    %833 = vmatpush1.msra.mxu0 %v146
    %834 = vmatprep.subr.mxu0 %v149
    %835 = vmatpush1.msra.mxu0 %v148
    %836 = vmatprep.subr.mxu0 %v151
    %837 = vmatpush1.msra.mxu0 %v150
    %838 = vmatprep.subr.mxu0 %v153
    %839 = vmatpush1.msra.mxu0 %v152
    %840 = vmatprep.mubr.f32.mxu0 %v769
    %841 = vmatmul.mubr.f32.gmra.mrb[0].mxu0 %v768
    %v842 = vpop.f32.mrb[0].mxu0
    %v843 = vadd.f32 0.0, %v842
    %v844 = vpop.f32.mrb[0].mxu0
    %v845 = vadd.f32 0.0, %v844
    %846 = vmatprep.mubr.f32.mxu0 %v771
    %847 = vmatmul.mubr.f32.gmra.mrb[0].mxu0 %v770
    %v848 = vpop.f32.mrb[0].mxu0
    %v849 = vadd.f32 0.0, %v848
    %v850 = vpop.f32.mrb[0].mxu0
    %v851 = vadd.f32 0.0, %v850
    %852 = vdwg.mxu0
    %v853 = vsub.f32 %v772, %v843
    %v854 = vsub.f32 %v773, %v845
    %v855 = vsub.f32 %v774, %v849
    %v856 = vsub.f32 %v775, %v851
    %v857 = vmax.f32 %v853, -0.017657414
    %v858 = vmax.f32 %v854, -0.017657414
    %v859 = vmax.f32 %v855, -0.017657414
    %v860 = vmax.f32 %v856, -0.017657414
    %v861 = vmin.f32 %v857, 0.017657414
    %v862 = vmin.f32 %v858, 0.017657414
    %v863 = vmin.f32 %v859, 0.017657414
    %v864 = vmin.f32 %v860, 0.017657414
    %v865 = vsub.f32 %v853, %v861
    %v866 = vsub.f32 %v854, %v862
    %v867 = vsub.f32 %v855, %v863
    %v868 = vsub.f32 %v856, %v864
    %v869 = vsub.f32 %v865, %v756
    %v870 = vsub.f32 %v866, %v757
    %v871 = vsub.f32 %v867, %v758
    %v872 = vsub.f32 %v868, %v759
    %v873 = vmul.f32 %v869, 0.64892334
    %v874 = vmul.f32 %v870, 0.64892334
    %v875 = vmul.f32 %v871, 0.64892334
    %v876 = vmul.f32 %v872, 0.64892334
    %v877 = vadd.f32 %v865, %v873
    %v878 = vadd.f32 %v866, %v874
    %v879 = vadd.f32 %v867, %v875
    %v880 = vadd.f32 %v868, %v876
    %v881 = vadd.f32 %v877, %v221
    %v882 = vadd.f32 %v878, %v223
    %v883 = vadd.f32 %v879, %v227
    %v884 = vadd.f32 %v880, %v229
    %885 = vmatprep.subr.mxu0 %v91
    %886 = vmatpush1.msra.mxu0 %v90
    %887 = vmatprep.subr.mxu0 %v93
    %888 = vmatpush1.msra.mxu0 %v92
    %889 = vmatprep.subr.mxu0 %v95
    %890 = vmatpush1.msra.mxu0 %v94
    %891 = vmatprep.subr.mxu0 %v97
    %892 = vmatpush1.msra.mxu0 %v96
    %893 = vmatprep.subr.mxu0 %v99
    %894 = vmatpush1.msra.mxu0 %v98
    %895 = vmatprep.subr.mxu0 %v101
    %896 = vmatpush1.msra.mxu0 %v100
    %897 = vmatprep.subr.mxu0 %v103
    %898 = vmatpush1.msra.mxu0 %v102
    %899 = vmatprep.subr.mxu0 %v105
    %900 = vmatpush1.msra.mxu0 %v104
    %901 = vmatprep.subr.mxu0 %v107
    %902 = vmatpush1.msra.mxu0 %v106
    %903 = vmatprep.subr.mxu0 %v109
    %904 = vmatpush1.msra.mxu0 %v108
    %905 = vmatprep.subr.mxu0 %v111
    %906 = vmatpush1.msra.mxu0 %v110
    %907 = vmatprep.subr.mxu0 %v113
    %908 = vmatpush1.msra.mxu0 %v112
    %909 = vmatprep.subr.mxu0 %v115
    %910 = vmatpush1.msra.mxu0 %v114
    %911 = vmatprep.subr.mxu0 %v117
    %912 = vmatpush1.msra.mxu0 %v116
    %913 = vmatprep.subr.mxu0 %v119
    %914 = vmatpush1.msra.mxu0 %v118
    %915 = vmatprep.subr.mxu0 %v121
    %916 = vmatpush1.msra.mxu0 %v120
    %917 = vmatprep.subr.mxu0 %v123
    %918 = vmatpush1.msra.mxu0 %v122
    %919 = vmatprep.subr.mxu0 %v125
    %920 = vmatpush1.msra.mxu0 %v124
    %921 = vmatprep.subr.mxu0 %v127
    %922 = vmatpush1.msra.mxu0 %v126
    %923 = vmatprep.subr.mxu0 %v129
    %924 = vmatpush1.msra.mxu0 %v128
    %925 = vmatprep.subr.mxu0 %v131
    %926 = vmatpush1.msra.mxu0 %v130
    %927 = vmatprep.subr.mxu0 %v133
    %928 = vmatpush1.msra.mxu0 %v132
    %929 = vmatprep.subr.mxu0 %v135
    %930 = vmatpush1.msra.mxu0 %v134
    %931 = vmatprep.subr.mxu0 %v137
    %932 = vmatpush1.msra.mxu0 %v136
    %933 = vmatprep.subr.mxu0 %v139
    %934 = vmatpush1.msra.mxu0 %v138
    %935 = vmatprep.subr.mxu0 %v141
    %936 = vmatpush1.msra.mxu0 %v140
    %937 = vmatprep.subr.mxu0 %v143
    %938 = vmatpush1.msra.mxu0 %v142
    %939 = vmatprep.subr.mxu0 %v145
    %940 = vmatpush1.msra.mxu0 %v144
    %941 = vmatprep.subr.mxu0 %v147
    %942 = vmatpush1.msra.mxu0 %v146
    %943 = vmatprep.subr.mxu0 %v149
    %944 = vmatpush1.msra.mxu0 %v148
    %945 = vmatprep.subr.mxu0 %v151
    %946 = vmatpush1.msra.mxu0 %v150
    %947 = vmatprep.subr.mxu0 %v153
    %948 = vmatpush1.msra.mxu0 %v152
    %949 = vmatprep.mubr.f32.mxu0 %v878
    %950 = vmatmul.mubr.f32.gmra.mrb[0].mxu0 %v877
    %v951 = vpop.f32.mrb[0].mxu0
    %v952 = vadd.f32 0.0, %v951
    %v953 = vpop.f32.mrb[0].mxu0
    %v954 = vadd.f32 0.0, %v953
    %955 = vmatprep.mubr.f32.mxu0 %v880
    %956 = vmatmul.mubr.f32.gmra.mrb[0].mxu0 %v879
    %v957 = vpop.f32.mrb[0].mxu0
    %v958 = vadd.f32 0.0, %v957
    %v959 = vpop.f32.mrb[0].mxu0
    %v960 = vadd.f32 0.0, %v959
    %961 = vdwg.mxu0
    %v962 = vsub.f32 %v881, %v952
    %v963 = vsub.f32 %v882, %v954
    %v964 = vsub.f32 %v883, %v958
    %v965 = vsub.f32 %v884, %v960
    %v966 = vmax.f32 %v962, -0.017657414
    %v967 = vmax.f32 %v963, -0.017657414
    %v968 = vmax.f32 %v964, -0.017657414
    %v969 = vmax.f32 %v965, -0.017657414
    %v970 = vmin.f32 %v966, 0.017657414
    %v971 = vmin.f32 %v967, 0.017657414
    %v972 = vmin.f32 %v968, 0.017657414
    %v973 = vmin.f32 %v969, 0.017657414
    %v974 = vsub.f32 %v962, %v970
    %v975 = vsub.f32 %v963, %v971
    %v976 = vsub.f32 %v964, %v972
    %v977 = vsub.f32 %v965, %v973
    %v978 = vsub.f32 %v974, %v865
    %v979 = vsub.f32 %v975, %v866
    %v980 = vsub.f32 %v976, %v867
    %v981 = vsub.f32 %v977, %v868
    %v982 = vmul.f32 %v978, 0.68764585
    %v983 = vmul.f32 %v979, 0.68764585
    %v984 = vmul.f32 %v980, 0.68764585
    %v985 = vmul.f32 %v981, 0.68764585
    %v986 = vadd.f32 %v974, %v982
    %v987 = vadd.f32 %v975, %v983
    %v988 = vadd.f32 %v976, %v984
    %v989 = vadd.f32 %v977, %v985
    %v990 = vadd.f32 %v986, %v221
    %v991 = vadd.f32 %v987, %v223
    %v992 = vadd.f32 %v988, %v227
    %v993 = vadd.f32 %v989, %v229
    %994 = vmatprep.subr.mxu0 %v91
    %995 = vmatpush1.msra.mxu0 %v90
    %996 = vmatprep.subr.mxu0 %v93
    %997 = vmatpush1.msra.mxu0 %v92
    %998 = vmatprep.subr.mxu0 %v95
    %999 = vmatpush1.msra.mxu0 %v94
    %1000 = vmatprep.subr.mxu0 %v97
    %1001 = vmatpush1.msra.mxu0 %v96
    %1002 = vmatprep.subr.mxu0 %v99
    %1003 = vmatpush1.msra.mxu0 %v98
    %1004 = vmatprep.subr.mxu0 %v101
    %1005 = vmatpush1.msra.mxu0 %v100
    %1006 = vmatprep.subr.mxu0 %v103
    %1007 = vmatpush1.msra.mxu0 %v102
    %1008 = vmatprep.subr.mxu0 %v105
    %1009 = vmatpush1.msra.mxu0 %v104
    %1010 = vmatprep.subr.mxu0 %v107
    %1011 = vmatpush1.msra.mxu0 %v106
    %1012 = vmatprep.subr.mxu0 %v109
    %1013 = vmatpush1.msra.mxu0 %v108
    %1014 = vmatprep.subr.mxu0 %v111
    %1015 = vmatpush1.msra.mxu0 %v110
    %1016 = vmatprep.subr.mxu0 %v113
    %1017 = vmatpush1.msra.mxu0 %v112
    %1018 = vmatprep.subr.mxu0 %v115
    %1019 = vmatpush1.msra.mxu0 %v114
    %1020 = vmatprep.subr.mxu0 %v117
    %1021 = vmatpush1.msra.mxu0 %v116
    %1022 = vmatprep.subr.mxu0 %v119
    %1023 = vmatpush1.msra.mxu0 %v118
    %1024 = vmatprep.subr.mxu0 %v121
    %1025 = vmatpush1.msra.mxu0 %v120
    %1026 = vmatprep.subr.mxu0 %v123
    %1027 = vmatpush1.msra.mxu0 %v122
    %1028 = vmatprep.subr.mxu0 %v125
    %1029 = vmatpush1.msra.mxu0 %v124
    %1030 = vmatprep.subr.mxu0 %v127
    %1031 = vmatpush1.msra.mxu0 %v126
    %1032 = vmatprep.subr.mxu0 %v129
    %1033 = vmatpush1.msra.mxu0 %v128
    %1034 = vmatprep.subr.mxu0 %v131
    %1035 = vmatpush1.msra.mxu0 %v130
    %1036 = vmatprep.subr.mxu0 %v133
    %1037 = vmatpush1.msra.mxu0 %v132
    %1038 = vmatprep.subr.mxu0 %v135
    %1039 = vmatpush1.msra.mxu0 %v134
    %1040 = vmatprep.subr.mxu0 %v137
    %1041 = vmatpush1.msra.mxu0 %v136
    %1042 = vmatprep.subr.mxu0 %v139
    %1043 = vmatpush1.msra.mxu0 %v138
    %1044 = vmatprep.subr.mxu0 %v141
    %1045 = vmatpush1.msra.mxu0 %v140
    %1046 = vmatprep.subr.mxu0 %v143
    %1047 = vmatpush1.msra.mxu0 %v142
    %1048 = vmatprep.subr.mxu0 %v145
    %1049 = vmatpush1.msra.mxu0 %v144
    %1050 = vmatprep.subr.mxu0 %v147
    %1051 = vmatpush1.msra.mxu0 %v146
    %1052 = vmatprep.subr.mxu0 %v149
    %1053 = vmatpush1.msra.mxu0 %v148
    %1054 = vmatprep.subr.mxu0 %v151
    %1055 = vmatpush1.msra.mxu0 %v150
    %1056 = vmatprep.subr.mxu0 %v153
    %1057 = vmatpush1.msra.mxu0 %v152
    %1058 = vmatprep.mubr.f32.mxu0 %v987
    %1059 = vmatmul.mubr.f32.gmra.mrb[0].mxu0 %v986
    %v1060 = vpop.f32.mrb[0].mxu0
    %v1061 = vadd.f32 0.0, %v1060
    %v1062 = vpop.f32.mrb[0].mxu0
    %v1063 = vadd.f32 0.0, %v1062
    %1064 = vmatprep.mubr.f32.mxu0 %v989
    %1065 = vmatmul.mubr.f32.gmra.mrb[0].mxu0 %v988
    %v1066 = vpop.f32.mrb[0].mxu0
    %v1067 = vadd.f32 0.0, %v1066
    %v1068 = vpop.f32.mrb[0].mxu0
    %v1069 = vadd.f32 0.0, %v1068
    %1070 = vdwg.mxu0
    %v1071 = vsub.f32 %v990, %v1061
    %v1072 = vsub.f32 %v991, %v1063
    %v1073 = vsub.f32 %v992, %v1067
    %v1074 = vsub.f32 %v993, %v1069
    %v1075 = vmax.f32 %v1071, -0.017657414
    %v1076 = vmax.f32 %v1072, -0.017657414
    %v1077 = vmax.f32 %v1073, -0.017657414
    %v1078 = vmax.f32 %v1074, -0.017657414
    %v1079 = vmin.f32 %v1075, 0.017657414
    %v1080 = vmin.f32 %v1076, 0.017657414
    %v1081 = vmin.f32 %v1077, 0.017657414
    %v1082 = vmin.f32 %v1078, 0.017657414
    %v1083 = vsub.f32 %v1071, %v1079
    %v1084 = vsub.f32 %v1072, %v1080
    %v1085 = vsub.f32 %v1073, %v1081
    %v1086 = vsub.f32 %v1074, %v1082
    %v1087 = vsub.f32 %v1083, %v974
    %v1088 = vsub.f32 %v1084, %v975
    %v1089 = vsub.f32 %v1085, %v976
    %v1090 = vsub.f32 %v1086, %v977
    %v1091 = vmul.f32 %v1087, 0.71849984
    %v1092 = vmul.f32 %v1088, 0.71849984
    %v1093 = vmul.f32 %v1089, 0.71849984
    %v1094 = vmul.f32 %v1090, 0.71849984
    %v1095 = vadd.f32 %v1083, %v1091
    %v1096 = vadd.f32 %v1084, %v1092
    %v1097 = vadd.f32 %v1085, %v1093
    %v1098 = vadd.f32 %v1086, %v1094
    %1099 = vst [vmem:[#allocation8] sm:$0xff] %v1095
    %1100 = vst [vmem:[#allocation8 + $0x8] sm:$0xff] %v1096
    %1101 = vst [vmem:[#allocation8 + $0x10] sm:$0xff] %v1097
    %1102 = vst [vmem:[#allocation8 + $0x18] sm:$0xff] %v1098
    // Predicated region
    $region26: #{tpu_custom_call.1} parent=1 // pred_check
      _
    $region27: #{tpu_custom_call.1} parent=1 // pred_check_branch
      %1104 = sbr.rel (0) target = $region29
    $region28: #{tpu_custom_call.1} parent=1 // pred_region
      %s1106 = ssub.s32 512, 512
      %1107 = vsyncadd [#allocation4], %s1106
      %s1108 = sshll.u32 [#allocation8], 4
      %s1109 = int_to_ptr.vmem [resolvable:$true] %s1108
      %1114 = dma.vmem_to_hbm [thread:$0]  %s1109, 512, %s3, [#allocation4], 256, 256, 16
    $region29: #{tpu_custom_call.1} parent=1 // pred_fallthru
      _
    // Predicated region
    $region30: #{tpu_custom_call.1} parent=1 // pred_check
      _
    $region31: #{tpu_custom_call.1} parent=1 // pred_check_branch
      %1116 = sbr.rel (0) target = $region33
    $region32: #{tpu_custom_call.1} parent=1 // pred_region
      %1117 = dma.done [#allocation4], 512
    $region33: #{tpu_custom_call.1} parent=1 // pred_fallthru
      _
    %1118 = vsyncpa [#allocation3], 1
    %1119 = vsyncpa [#allocation6], 1
    %1120 = vsyncpa [#allocation4], 1

</llo_original>
